<compile_context>
chip_gen: v7x
topology: tpu7x:2x2x1
jax: 0.10.0
libtpu: 0.0.40
codegen_flags: <defaults>
</compile_context>

<pallas_src>
import functools

import jax
import jax.numpy as jnp
from jax.experimental import pallas as pl
from jax.experimental.pallas import tpu as pltpu

IN_FEATURES = 4096
CLF_NEURONS = 256   # params['clf_neurons']
NUM_CLASSES = 2


def _classifier_kernel(x_ref, w1_ref, b1_ref, w2t_ref, b2_ref, o_ref):
    # Dropout layers are identity in eval mode.
    # First Linear: cast the f32 stream to bf16 on the VPU (hidden under the
    # x-tile DMA) and accumulate in f32 on the MXU.
    x = x_ref[...].astype(jnp.bfloat16)
    w1 = w1_ref[...].astype(jnp.bfloat16)
    h = jnp.dot(x, w1, preferred_element_type=jnp.float32)
    h = jnp.maximum(h + b1_ref[...], 0.0)                        # (TB, H) f32

    # Second Linear (H -> 2) off the MXU: per-class VPU multiply + cross-lane
    # reduce.  Rows of w2t are lane-vectors so the broadcasts are free.
    w2t = w2t_ref[...]                                           # (2, H) f32
    logit0 = jnp.sum(h * w2t[0:1, :], axis=-1, keepdims=True)    # (TB, 1)
    logit1 = jnp.sum(h * w2t[1:2, :], axis=-1, keepdims=True)    # (TB, 1)
    logits = jnp.concatenate([logit0, logit1], axis=-1) + b2_ref[...]   # (TB, 2)

    # Numerically stable log-softmax over the 2 classes.
    m = jnp.max(logits, axis=-1, keepdims=True)
    z = logits - m
    lse = jnp.log(jnp.sum(jnp.exp(z), axis=-1, keepdims=True))
    o_ref[...] = (z - lse).astype(o_ref.dtype)


def _round_up(n, m):
    return ((n + m - 1) // m) * m


def _vmem_capacity_bytes():
    try:
        return int(pltpu.get_tpu_info().vmem_capacity_bytes)
    except Exception:
        return 64 << 20   # conservative default: assume the smallest (v7x) VMEM


def _pick_batch_tile(B, vmem_bytes):
    # f32-streamed x: a 512-row tile is 16 MiB double-buffered -> safe on
    # 64 MiB parts (v7x); 1024 rows on 128 MiB parts (v5e/v6e) halves the
    # per-grid-step overhead for large batches.
    cap = 1024 if vmem_bytes >= (96 << 20) else 512
    if B <= 256:
        return _round_up(B, 8)                # tiny batch: no wasted rows
    n_tiles = max(2, pl.cdiv(B, cap))         # >= 2 steps so both v7x TCs get work
    return min(cap, _round_up(pl.cdiv(B, n_tiles), 128))


@functools.partial(jax.jit, static_argnames=("batch_tile",))
def concat_eff_models_fc(x, w1, b1, w2, b2, *, batch_tile=None):
    B, F_in = x.shape
    H = w1.shape[1]
    C = w2.shape[1]

    vmem_bytes = _vmem_capacity_bytes()
    if batch_tile is None:
        batch_tile = _pick_batch_tile(B, vmem_bytes)

    grid_m = pl.cdiv(B, batch_tile)
    rows_computed = grid_m * batch_tile        # includes clipped boundary rows

    # Tiny one-time ops; no full pass over x in the wrapper.
    w2t = jnp.transpose(w2).astype(jnp.float32)       # (C, H)
    b1 = b1.astype(jnp.float32).reshape(1, H)
    b2 = b2.astype(jnp.float32).reshape(1, C)

    xtile_f32 = batch_tile * F_in * 4
    w1_f32 = F_in * H * 4
    vmem_limit = int(
        2 * xtile_f32              # double-buffered f32 x stream
        + 2 * w1_f32               # resident W1 (pipeliner still allocates 2 bufs)
        + xtile_f32 // 2           # in-kernel bf16 copy of the x tile
        + w1_f32 // 2              # in-kernel bf16 copy of W1
        + batch_tile * H * 4       # h
        + (8 << 20))               # headroom for Mosaic-internal scratch
    vmem_limit = min(vmem_limit, vmem_bytes)

    cost = pl.CostEstimate(
        flops=2 * rows_computed * F_in * H + 2 * rows_computed * H * C,
        transcendentals=rows_computed * (C + 1),
        bytes_accessed=(rows_computed * F_in * 4      # x (f32, streamed once)
                        + F_in * H * 4                # W1 (f32, fetched once)
                        + H * C * 4 + (H + C) * 4     # W2^T + biases
                        + rows_computed * C * 4),     # output
    )

    out = pl.pallas_call(
        _classifier_kernel,
        out_shape=jax.ShapeDtypeStruct((B, C), jnp.float32),
        grid_spec=pltpu.PrefetchScalarGridSpec(
            num_scalar_prefetch=0,
            grid=(grid_m,),
            in_specs=[
                pl.BlockSpec((batch_tile, F_in), lambda i: (i, 0)),  # x tile (streamed)
                pl.BlockSpec((F_in, H), lambda i: (0, 0)),           # W1 (VMEM-resident)
                pl.BlockSpec((1, H), lambda i: (0, 0)),              # b1
                pl.BlockSpec((C, H), lambda i: (0, 0)),              # W2^T
                pl.BlockSpec((1, C), lambda i: (0, 0)),              # b2
            ],
            out_specs=pl.BlockSpec((batch_tile, C), lambda i: (i, 0)),
        ),
        compiler_params=pltpu.CompilerParams(
            dimension_semantics=("parallel",),
            vmem_limit_bytes=vmem_limit,
        ),
        cost_estimate=cost,
    )(x, w1, b1, w2t, b2)

    return out


def init_params(key, in_features=IN_FEATURES, hidden=CLF_NEURONS, classes=NUM_CLASSES):
    # Deterministic synthetic init (PyTorch-Linear-like uniform bounds).
    k1, k2, k3, k4 = jax.random.split(key, 4)
    bound1 = 1.0 / (in_features ** 0.5)
    bound2 = 1.0 / (hidden ** 0.5)
    w1 = jax.random.uniform(k1, (in_features, hidden), jnp.float32, -bound1, bound1)
    b1 = jax.random.uniform(k2, (1, hidden), jnp.float32, -bound1, bound1)
    w2 = jax.random.uniform(k3, (hidden, classes), jnp.float32, -bound2, bound2)
    b2 = jax.random.uniform(k4, (1, classes), jnp.float32, -bound2, bound2)
    return w1, b1, w2, b2


def _reference(x, w1, b1, w2, b2):
    # Same bf16-operand / f32-accumulate contract as the kernel (documented
    # precision choice; not bit-faithful to an all-f32 PyTorch module).
    xb = x.astype(jnp.bfloat16)
    w1b = w1.astype(jnp.bfloat16)
    h = jnp.maximum(jnp.dot(xb, w1b, preferred_element_type=jnp.float32) + b1, 0.0)
    return jax.nn.log_softmax(h @ w2 + b2, axis=1)


if __name__ == "__main__":
    key = jax.random.PRNGKey(0)
    kx, kp = jax.random.split(key)

    w1, b1, w2, b2 = init_params(kp)

    # TODO(synk): Dropout is inference-mode identity; training-mode RNG masking not implemented.

    # Small batch: exercises the no-padding tiny-tile path (tile == 8 rows).
    B = 8
    x = jax.random.normal(kx, (B, IN_FEATURES), jnp.float32)
    out = jax.block_until_ready(concat_eff_models_fc(x, w1, b1, w2, b2))
    ref = _reference(x, w1, b1, w2, b2)
    assert out.shape == (B, NUM_CLASSES)
    assert jnp.allclose(out, ref, atol=5e-3, rtol=5e-3), "mismatch vs reference (B=8)"

    # Ragged multi-tile batch: exercises grid_m >= 2 and boundary-block clipping.
    B2 = 300
    x2 = jax.random.normal(kx, (B2, IN_FEATURES), jnp.float32)
    out2 = jax.block_until_ready(concat_eff_models_fc(x2, w1, b1, w2, b2))
    ref2 = _reference(x2, w1, b1, w2, b2)
    assert out2.shape == (B2, NUM_CLASSES)
    assert jnp.allclose(out2, ref2, atol=5e-3, rtol=5e-3), "mismatch vs reference (B=300)"

    print("KERNEL_OK")
</pallas_src>

<mosaic_0001>
module attributes {stable_mosaic.version = 11 : i64} {
  func.func @_classifier_kernel(%arg0: i32, %arg1: memref<8x4096xf32, #tpu.memory_space<vmem>>, %arg2: memref<4096x256xf32, #tpu.memory_space<vmem>>, %arg3: memref<1x256xf32, #tpu.memory_space<vmem>>, %arg4: memref<2x256xf32, #tpu.memory_space<vmem>>, %arg5: memref<1x2xf32, #tpu.memory_space<vmem>>, %arg6: memref<8x2xf32, #tpu.memory_space<vmem>>) attributes {dimension_semantics = [#tpu.dimension_semantics<parallel>], iteration_bounds = array<i64: 1>, scalar_prefetch = 0 : i64, scratch_operands = 0 : i64, tpu.core_type = #tpu.core_type<tc>, window_params = [{transform_indices = @transform_0, window_bounds = array<i64: 8, 4096>}, {pipeline_mode = #tpu.pipeline_mode<synchronous>, transform_indices = @transform_1, window_bounds = array<i64: 4096, 256>}, {pipeline_mode = #tpu.pipeline_mode<synchronous>, transform_indices = @transform_2, window_bounds = array<i64: 1, 256>}, {pipeline_mode = #tpu.pipeline_mode<synchronous>, transform_indices = @transform_3, window_bounds = array<i64: 2, 256>}, {pipeline_mode = #tpu.pipeline_mode<synchronous>, transform_indices = @transform_4, window_bounds = array<i64: 1, 2>}, {transform_indices = @transform_5, window_bounds = array<i64: 8, 2>}]} {
    %c0 = arith.constant 0 : index
    %c0_0 = arith.constant 0 : index
    %0 = vector.load %arg1[%c0, %c0_0] : memref<8x4096xf32, #tpu.memory_space<vmem>>, vector<8x4096xf32>
    %1 = arith.truncf %0 : vector<8x4096xf32> to vector<8x4096xbf16>
    %c0_1 = arith.constant 0 : index
    %c0_2 = arith.constant 0 : index
    %2 = vector.load %arg2[%c0_1, %c0_2] : memref<4096x256xf32, #tpu.memory_space<vmem>>, vector<4096x256xf32>
    %3 = arith.truncf %2 : vector<4096x256xf32> to vector<4096x256xbf16>
    %cst = arith.constant dense<0.000000e+00> : vector<8x256xf32>
    %4 = tpu.matmul %1, %3, %cst {dimension_numbers = #tpu.dot_dimension_numbers<[1], [0], [0], [1], [0, 0, 1, 1], [], []>} : vector<8x4096xbf16>, vector<4096x256xbf16>, vector<8x256xf32> -> vector<8x256xf32>
    %c0_3 = arith.constant 0 : index
    %c0_4 = arith.constant 0 : index
    %5 = vector.load %arg3[%c0_3, %c0_4] : memref<1x256xf32, #tpu.memory_space<vmem>>, vector<1x256xf32>
    %6 = vector.broadcast %5 : vector<1x256xf32> to vector<8x256xf32>
    %7 = arith.addf %4, %6 : vector<8x256xf32>
    %cst_5 = arith.constant 0.000000e+00 : f32
    %8 = vector.broadcast %cst_5 : f32 to vector<8x256xf32>
    %9 = arith.maximumf %7, %8 : vector<8x256xf32>
    %c0_6 = arith.constant 0 : index
    %c0_7 = arith.constant 0 : index
    %10 = vector.load %arg4[%c0_6, %c0_7] : memref<2x256xf32, #tpu.memory_space<vmem>>, vector<2x256xf32>
    %11 = vector.extract_strided_slice %10 {offsets = [0, 0], sizes = [1, 256], strides = [1, 1]} : vector<2x256xf32> to vector<1x256xf32>
    %12 = vector.broadcast %11 : vector<1x256xf32> to vector<8x256xf32>
    %13 = arith.mulf %9, %12 : vector<8x256xf32>
    %cst_8 = arith.constant dense<0.000000e+00> : vector<8xf32>
    %14 = vector.multi_reduction <add>, %13, %cst_8 [1] : vector<8x256xf32> to vector<8xf32>
    %15 = vector.shape_cast %14 : vector<8xf32> to vector<8x1xf32>
    %16 = vector.extract_strided_slice %10 {offsets = [1, 0], sizes = [1, 256], strides = [1, 1]} : vector<2x256xf32> to vector<1x256xf32>
    %17 = vector.broadcast %16 : vector<1x256xf32> to vector<8x256xf32>
    %18 = arith.mulf %9, %17 : vector<8x256xf32>
    %cst_9 = arith.constant dense<0.000000e+00> : vector<8xf32>
    %19 = vector.multi_reduction <add>, %18, %cst_9 [1] : vector<8x256xf32> to vector<8xf32>
    %20 = vector.shape_cast %19 : vector<8xf32> to vector<8x1xf32>
    %21 = tpu.concatenate %15, %20 in 1 : vector<8x1xf32>, vector<8x1xf32> -> vector<8x2xf32>
    %c0_10 = arith.constant 0 : index
    %c0_11 = arith.constant 0 : index
    %22 = vector.load %arg5[%c0_10, %c0_11] : memref<1x2xf32, #tpu.memory_space<vmem>>, vector<1x2xf32>
    %23 = vector.broadcast %22 : vector<1x2xf32> to vector<8x2xf32>
    %24 = arith.addf %21, %23 : vector<8x2xf32>
    %cst_12 = arith.constant dense<0xFF800000> : vector<8xf32>
    %25 = vector.multi_reduction <maximumf>, %24, %cst_12 [1] : vector<8x2xf32> to vector<8xf32>
    %26 = vector.shape_cast %25 : vector<8xf32> to vector<8x1xf32>
    %27 = vector.broadcast %26 : vector<8x1xf32> to vector<8x2xf32>
    %28 = arith.subf %24, %27 : vector<8x2xf32>
    %29 = math.exp %28 : vector<8x2xf32>
    %cst_13 = arith.constant dense<0.000000e+00> : vector<8xf32>
    %30 = vector.multi_reduction <add>, %29, %cst_13 [1] : vector<8x2xf32> to vector<8xf32>
    %31 = vector.shape_cast %30 : vector<8xf32> to vector<8x1xf32>
    %32 = math.log %31 : vector<8x1xf32>
    %33 = vector.broadcast %32 : vector<8x1xf32> to vector<8x2xf32>
    %34 = arith.subf %28, %33 : vector<8x2xf32>
    %c0_14 = arith.constant 0 : index
    %c0_15 = arith.constant 0 : index
    %35 = vector.load %arg6[%c0_14, %c0_15] : memref<8x2xf32, #tpu.memory_space<vmem>>, vector<8x2xf32>
    tpu.vector_store %arg6[%c0_14, %c0_15], %34 {strides = array<i32>} : memref<8x2xf32, #tpu.memory_space<vmem>>, vector<8x2xf32>,
    return
  }
  func.func @transform_0(%arg0: i32) -> (i32, i32) {
    %c0_i32 = arith.constant 0 : i32
    %c0_i32_0 = arith.constant 0 : i32
    return %arg0, %c0_i32 : i32, i32
  }
  func.func @transform_1(%arg0: i32) -> (i32, i32) {
    %c0_i32 = arith.constant 0 : i32
    %c0_i32_0 = arith.constant 0 : i32
    %c0_i32_1 = arith.constant 0 : i32
    return %c0_i32, %c0_i32_0 : i32, i32
  }
  func.func @transform_2(%arg0: i32) -> (i32, i32) {
    %c0_i32 = arith.constant 0 : i32
    %c0_i32_0 = arith.constant 0 : i32
    %c0_i32_1 = arith.constant 0 : i32
    return %c0_i32, %c0_i32_0 : i32, i32
  }
  func.func @transform_3(%arg0: i32) -> (i32, i32) {
    %c0_i32 = arith.constant 0 : i32
    %c0_i32_0 = arith.constant 0 : i32
    %c0_i32_1 = arith.constant 0 : i32
    return %c0_i32, %c0_i32_0 : i32, i32
  }
  func.func @transform_4(%arg0: i32) -> (i32, i32) {
    %c0_i32 = arith.constant 0 : i32
    %c0_i32_0 = arith.constant 0 : i32
    %c0_i32_1 = arith.constant 0 : i32
    return %c0_i32, %c0_i32_0 : i32, i32
  }
  func.func @transform_5(%arg0: i32) -> (i32, i32) {
    %c0_i32 = arith.constant 0 : i32
    %c0_i32_0 = arith.constant 0 : i32
    return %arg0, %c0_i32 : i32, i32
  }
}

</mosaic_0001>

<llo_original>
// kernel: concat_eff_models_fc.1
$region0: #{concat_eff_models_fc.1}
  #allocation0 [shape = 'u32[]', space=smem, size = 0x4, offset = 0x4, fixed_abs, tag = 'smem constant byte address 0x4 - core index']
  #allocation1 [shape = 'u32[144,128]{1,0:T(1,128)}', space=vmem, size = 0x12000, scoped, tag = 'internal scratch']
  %s0 = inlined_call_operand.hbm [shape: f32[8,4096], index: 0, kind: input, shape index: {}]
  %s1 = inlined_call_operand.hbm [shape: f32[4096,256], index: 1, kind: input, shape index: {}]
  %s2 = inlined_call_operand.hbm [shape: f32[1,256], index: 2, kind: input, shape index: {}]
  %s3 = inlined_call_operand.hbm [shape: f32[2,256], index: 3, kind: input, shape index: {}]
  %s4 = inlined_call_operand.hbm [shape: f32[1,2], index: 4, kind: input, shape index: {}]
  %s5 = inlined_call_operand.vmem [shape: f32[8,2], index: 5, kind: output, shape index: {}]
  %s6 = sld [smem:[#allocation0]]
  $region50: #{concat_eff_models_fc.1} parent=0
    _
  %s8 = ssub.s32 1, %s6
  %s9 = scalar_select 0, %s8, %s6
  $region1: #{concat_eff_models_fc.1} parent=0
    #allocation2 [shape = 'u8[131072]{0}', space=vmem, size = 0x20000, scoped, tag = 'input window, operand 0, single buffered']
    #allocation3 [shape = 's32[1]{0}', space=sflag, size = 0x4, scoped, tag = 'scoped memory for concat_eff_models_fc.1']
    #allocation4 [shape = 'u8[4194304]{0}', space=vmem, size = 0x400000, scoped, tag = 'input window, operand 1, single buffered']
    #allocation5 [shape = 's32[1]{0}', space=sflag, size = 0x4, scoped, tag = 'scoped memory for concat_eff_models_fc.1']
    #allocation6 [shape = 'u8[1024]{0}', space=vmem, size = 0x400, scoped, tag = 'input window, operand 2, single buffered']
    #allocation7 [shape = 'u8[2048]{0}', space=vmem, size = 0x800, scoped, tag = 'input window, operand 3, single buffered']
    #allocation8 [shape = 's32[1]{0}', space=sflag, size = 0x4, scoped, tag = 'scoped memory for concat_eff_models_fc.1']
    #allocation9 [shape = 'u8[512]{0}', space=vmem, size = 0x400, scoped, tag = 'input window, operand 4, single buffered']
    %10 = vsyncpa [#allocation3], 0
    %11 = vsyncpa [#allocation5], 0
    %12 = vsyncpa [#allocation8], 0
    // Predicated region
    $region2: #{concat_eff_models_fc.1} parent=1 // pred_check
      _
    $region3: #{concat_eff_models_fc.1} parent=1 // pred_check_branch
      %14 = sbr.rel (0) target = $region5
    $region4: #{concat_eff_models_fc.1} parent=1 // pred_region
      %s16 = ssub.s32 4096, 4096
      %17 = vsyncadd [#allocation3], %s16
      %s19 = sshll.u32 [#allocation2], 4
      %s20 = int_to_ptr.vmem [resolvable:$true] %s19
      %22 = dma.hbm_to_vmem [thread:$0]  %s0, 4096, %s20, [#allocation3]
    $region5: #{concat_eff_models_fc.1} parent=1 // pred_fallthru
      _
    // Predicated region
    $region6: #{concat_eff_models_fc.1} parent=1 // pred_check
      _
    $region7: #{concat_eff_models_fc.1} parent=1 // pred_check_branch
      %24 = sbr.rel (0) target = $region9
    $region8: #{concat_eff_models_fc.1} parent=1 // pred_region
      %s26 = ssub.s32 131072, 131072
      %27 = vsyncadd [#allocation5], %s26
      %s28 = sshll.u32 [#allocation4], 4
      %s29 = int_to_ptr.vmem [resolvable:$true] %s28
      %34 = dma.hbm_to_vmem [thread:$0]  %s1, 131072, %s29, [#allocation5], 256, 256, 16
    $region9: #{concat_eff_models_fc.1} parent=1 // pred_fallthru
      _
    // Predicated region
    $region10: #{concat_eff_models_fc.1} parent=1 // pred_check
      _
    $region11: #{concat_eff_models_fc.1} parent=1 // pred_check_branch
      %36 = sbr.rel (0) target = $region13
    $region12: #{concat_eff_models_fc.1} parent=1 // pred_region
      %s38 = ssub.s32 32, 32
      %39 = vsyncadd [#allocation5], %s38
      %s41 = sshll.u32 [#allocation6], 4
      %s42 = int_to_ptr.vmem [resolvable:$true] %s41
      %44 = dma.hbm_to_vmem [thread:$0]  %s2, 32, %s42, [#allocation5]
    $region13: #{concat_eff_models_fc.1} parent=1 // pred_fallthru
      _
    // Predicated region
    $region14: #{concat_eff_models_fc.1} parent=1 // pred_check
      _
    $region15: #{concat_eff_models_fc.1} parent=1 // pred_check_branch
      %46 = sbr.rel (0) target = $region17
    $region16: #{concat_eff_models_fc.1} parent=1 // pred_region
      %s48 = ssub.s32 64, 64
      %49 = vsyncadd [#allocation8], %s48
      %s51 = sshll.u32 [#allocation7], 4
      %s52 = int_to_ptr.vmem [resolvable:$true] %s51
      %54 = dma.hbm_to_vmem [thread:$0]  %s3, 64, %s52, [#allocation8]
    $region17: #{concat_eff_models_fc.1} parent=1 // pred_fallthru
      _
    // Predicated region
    $region18: #{concat_eff_models_fc.1} parent=1 // pred_check
      _
    $region19: #{concat_eff_models_fc.1} parent=1 // pred_check_branch
      %56 = sbr.rel (0) target = $region21
    $region20: #{concat_eff_models_fc.1} parent=1 // pred_region
      %s58 = ssub.s32 16, 16
      %59 = vsyncadd [#allocation8], %s58
      %s61 = sshll.u32 [#allocation9], 4
      %s62 = int_to_ptr.vmem [resolvable:$true] %s61
      %64 = dma.hbm_to_vmem [thread:$0]  %s4, 16, %s62, [#allocation8]
    $region21: #{concat_eff_models_fc.1} parent=1 // pred_fallthru
      _
    // Predicated region
    $region22: #{concat_eff_models_fc.1} parent=1 // pred_check
      _
    $region23: #{concat_eff_models_fc.1} parent=1 // pred_check_branch
      %66 = sbr.rel (0) target = $region25
    $region24: #{concat_eff_models_fc.1} parent=1 // pred_region
      %67 = dma.done [#allocation3], 4096
    $region25: #{concat_eff_models_fc.1} parent=1 // pred_fallthru
      _
    // Predicated region
    $region26: #{concat_eff_models_fc.1} parent=1 // pred_check
      _
    $region27: #{concat_eff_models_fc.1} parent=1 // pred_check_branch
      %69 = sbr.rel (0) target = $region29
    $region28: #{concat_eff_models_fc.1} parent=1 // pred_region
      %70 = dma.done [#allocation5], 131072
    $region29: #{concat_eff_models_fc.1} parent=1 // pred_fallthru
      _
    // Predicated region
    $region30: #{concat_eff_models_fc.1} parent=1 // pred_check
      _
    $region31: #{concat_eff_models_fc.1} parent=1 // pred_check_branch
      %72 = sbr.rel (0) target = $region33
    $region32: #{concat_eff_models_fc.1} parent=1 // pred_region
      %73 = dma.done [#allocation5], 32
    $region33: #{concat_eff_models_fc.1} parent=1 // pred_fallthru
      _
    // Predicated region
    $region34: #{concat_eff_models_fc.1} parent=1 // pred_check
      _
    $region35: #{concat_eff_models_fc.1} parent=1 // pred_check_branch
      %75 = sbr.rel (0) target = $region37
    $region36: #{concat_eff_models_fc.1} parent=1 // pred_region
      %76 = dma.done [#allocation8], 64
    $region37: #{concat_eff_models_fc.1} parent=1 // pred_fallthru
      _
    // Predicated region
    $region38: #{concat_eff_models_fc.1} parent=1 // pred_check
      _
    $region39: #{concat_eff_models_fc.1} parent=1 // pred_check_branch
      %78 = sbr.rel (0) target = $region41
    $region40: #{concat_eff_models_fc.1} parent=1 // pred_region
      %79 = dma.done [#allocation8], 16
    $region41: #{concat_eff_models_fc.1} parent=1 // pred_fallthru
      _
    %v80 = vld [vmem:[#allocation2] sm:$0xff]
    %v81 = vld [vmem:[#allocation2 + $0x8] sm:$0xff]
    %v82 = vld [vmem:[#allocation2 + $0x10] sm:$0xff]
    %v83 = vld [vmem:[#allocation2 + $0x18] sm:$0xff]
    %v84 = vld [vmem:[#allocation2 + $0x20] sm:$0xff]
    %v85 = vld [vmem:[#allocation2 + $0x28] sm:$0xff]
    %v86 = vld [vmem:[#allocation2 + $0x30] sm:$0xff]
    %v87 = vld [vmem:[#allocation2 + $0x38] sm:$0xff]
    %v88 = vld [vmem:[#allocation2 + $0x40] sm:$0xff]
    %v89 = vld [vmem:[#allocation2 + $0x48] sm:$0xff]
    %v90 = vld [vmem:[#allocation2 + $0x50] sm:$0xff]
    %v91 = vld [vmem:[#allocation2 + $0x58] sm:$0xff]
    %v92 = vld [vmem:[#allocation2 + $0x60] sm:$0xff]
    %v93 = vld [vmem:[#allocation2 + $0x68] sm:$0xff]
    %v94 = vld [vmem:[#allocation2 + $0x70] sm:$0xff]
    %v95 = vld [vmem:[#allocation2 + $0x78] sm:$0xff]
    %v96 = vld [vmem:[#allocation2 + $0x80] sm:$0xff]
    %v97 = vld [vmem:[#allocation2 + $0x88] sm:$0xff]
    %v98 = vld [vmem:[#allocation2 + $0x90] sm:$0xff]
    %v99 = vld [vmem:[#allocation2 + $0x98] sm:$0xff]
    %v100 = vld [vmem:[#allocation2 + $0xa0] sm:$0xff]
    %v101 = vld [vmem:[#allocation2 + $0xa8] sm:$0xff]
    %v102 = vld [vmem:[#allocation2 + $0xb0] sm:$0xff]
    %v103 = vld [vmem:[#allocation2 + $0xb8] sm:$0xff]
    %v104 = vld [vmem:[#allocation2 + $0xc0] sm:$0xff]
    %v105 = vld [vmem:[#allocation2 + $0xc8] sm:$0xff]
    %v106 = vld [vmem:[#allocation2 + $0xd0] sm:$0xff]
    %v107 = vld [vmem:[#allocation2 + $0xd8] sm:$0xff]
    %v108 = vld [vmem:[#allocation2 + $0xe0] sm:$0xff]
    %v109 = vld [vmem:[#allocation2 + $0xe8] sm:$0xff]
    %v110 = vld [vmem:[#allocation2 + $0xf0] sm:$0xff]
    %v111 = vld [vmem:[#allocation2 + $0xf8] sm:$0xff]
    %v112 = vpack.c.bf16 %v80, %v80
    %v113 = vpack.c.bf16 %v81, %v81
    %v114 = vpack.c.bf16 %v82, %v82
    %v115 = vpack.c.bf16 %v83, %v83
    %v116 = vpack.c.bf16 %v84, %v84
    %v117 = vpack.c.bf16 %v85, %v85
    %v118 = vpack.c.bf16 %v86, %v86
    %v119 = vpack.c.bf16 %v87, %v87
    %v120 = vpack.c.bf16 %v88, %v88
    %v121 = vpack.c.bf16 %v89, %v89
    %v122 = vpack.c.bf16 %v90, %v90
    %v123 = vpack.c.bf16 %v91, %v91
    %v124 = vpack.c.bf16 %v92, %v92
    %v125 = vpack.c.bf16 %v93, %v93
    %v126 = vpack.c.bf16 %v94, %v94
    %v127 = vpack.c.bf16 %v95, %v95
    %v128 = vpack.c.bf16 %v96, %v96
    %v129 = vpack.c.bf16 %v97, %v97
    %v130 = vpack.c.bf16 %v98, %v98
    %v131 = vpack.c.bf16 %v99, %v99
    %v132 = vpack.c.bf16 %v100, %v100
    %v133 = vpack.c.bf16 %v101, %v101
    %v134 = vpack.c.bf16 %v102, %v102
    %v135 = vpack.c.bf16 %v103, %v103
    %v136 = vpack.c.bf16 %v104, %v104
    %v137 = vpack.c.bf16 %v105, %v105
    %v138 = vpack.c.bf16 %v106, %v106
    %v139 = vpack.c.bf16 %v107, %v107
    %v140 = vpack.c.bf16 %v108, %v108
    %v141 = vpack.c.bf16 %v109, %v109
    %v142 = vpack.c.bf16 %v110, %v110
    %v143 = vpack.c.bf16 %v111, %v111
    %v144 = vld [vmem:[#allocation4] sm:$0xff]
    %v145 = vld [vmem:[#allocation4 + $0x8] sm:$0xff]
    %v146 = vld [vmem:[#allocation4 + $0x10] sm:$0xff]
    %v147 = vld [vmem:[#allocation4 + $0x18] sm:$0xff]
    %v148 = vld [vmem:[#allocation4 + $0x20] sm:$0xff]
    %v149 = vld [vmem:[#allocation4 + $0x28] sm:$0xff]
    %v150 = vld [vmem:[#allocation4 + $0x30] sm:$0xff]
    %v151 = vld [vmem:[#allocation4 + $0x38] sm:$0xff]
    %v152 = vld [vmem:[#allocation4 + $0x40] sm:$0xff]
    %v153 = vld [vmem:[#allocation4 + $0x48] sm:$0xff]
    %v154 = vld [vmem:[#allocation4 + $0x50] sm:$0xff]
    %v155 = vld [vmem:[#allocation4 + $0x58] sm:$0xff]
    %v156 = vld [vmem:[#allocation4 + $0x60] sm:$0xff]
    %v157 = vld [vmem:[#allocation4 + $0x68] sm:$0xff]
    %v158 = vld [vmem:[#allocation4 + $0x70] sm:$0xff]
    %v159 = vld [vmem:[#allocation4 + $0x78] sm:$0xff]
    %v160 = vld [vmem:[#allocation4 + $0x80] sm:$0xff]
    %v161 = vld [vmem:[#allocation4 + $0x88] sm:$0xff]
    %v162 = vld [vmem:[#allocation4 + $0x90] sm:$0xff]
    %v163 = vld [vmem:[#allocation4 + $0x98] sm:$0xff]
    %v164 = vld [vmem:[#allocation4 + $0xa0] sm:$0xff]
    %v165 = vld [vmem:[#allocation4 + $0xa8] sm:$0xff]
    %v166 = vld [vmem:[#allocation4 + $0xb0] sm:$0xff]
    %v167 = vld [vmem:[#allocation4 + $0xb8] sm:$0xff]
    %v168 = vld [vmem:[#allocation4 + $0xc0] sm:$0xff]
    %v169 = vld [vmem:[#allocation4 + $0xc8] sm:$0xff]
    %v170 = vld [vmem:[#allocation4 + $0xd0] sm:$0xff]
    %v171 = vld [vmem:[#allocation4 + $0xd8] sm:$0xff]
    %v172 = vld [vmem:[#allocation4 + $0xe0] sm:$0xff]
    %v173 = vld [vmem:[#allocation4 + $0xe8] sm:$0xff]
    %v174 = vld [vmem:[#allocation4 + $0xf0] sm:$0xff]
    %v175 = vld [vmem:[#allocation4 + $0xf8] sm:$0xff]
    %v176 = vld [vmem:[#allocation4 + $0x100] sm:$0xff]
    %v177 = vld [vmem:[#allocation4 + $0x108] sm:$0xff]
    %v178 = vld [vmem:[#allocation4 + $0x110] sm:$0xff]
    %v179 = vld [vmem:[#allocation4 + $0x118] sm:$0xff]
    %v180 = vld [vmem:[#allocation4 + $0x120] sm:$0xff]
    %v181 = vld [vmem:[#allocation4 + $0x128] sm:$0xff]
    %v182 = vld [vmem:[#allocation4 + $0x130] sm:$0xff]
    %v183 = vld [vmem:[#allocation4 + $0x138] sm:$0xff]
    %v184 = vld [vmem:[#allocation4 + $0x140] sm:$0xff]
    %v185 = vld [vmem:[#allocation4 + $0x148] sm:$0xff]
    %v186 = vld [vmem:[#allocation4 + $0x150] sm:$0xff]
    %v187 = vld [vmem:[#allocation4 + $0x158] sm:$0xff]
    %v188 = vld [vmem:[#allocation4 + $0x160] sm:$0xff]
    %v189 = vld [vmem:[#allocation4 + $0x168] sm:$0xff]
    %v190 = vld [vmem:[#allocation4 + $0x170] sm:$0xff]
    %v191 = vld [vmem:[#allocation4 + $0x178] sm:$0xff]
    %v192 = vld [vmem:[#allocation4 + $0x180] sm:$0xff]
    %v193 = vld [vmem:[#allocation4 + $0x188] sm:$0xff]
    %v194 = vld [vmem:[#allocation4 + $0x190] sm:$0xff]
    %v195 = vld [vmem:[#allocation4 + $0x198] sm:$0xff]
    %v196 = vld [vmem:[#allocation4 + $0x1a0] sm:$0xff]
    %v197 = vld [vmem:[#allocation4 + $0x1a8] sm:$0xff]
    %v198 = vld [vmem:[#allocation4 + $0x1b0] sm:$0xff]
    %v199 = vld [vmem:[#allocation4 + $0x1b8] sm:$0xff]
    %v200 = vld [vmem:[#allocation4 + $0x1c0] sm:$0xff]
    %v201 = vld [vmem:[#allocation4 + $0x1c8] sm:$0xff]
    %v202 = vld [vmem:[#allocation4 + $0x1d0] sm:$0xff]
    %v203 = vld [vmem:[#allocation4 + $0x1d8] sm:$0xff]
    %v204 = vld [vmem:[#allocation4 + $0x1e0] sm:$0xff]
    %v205 = vld [vmem:[#allocation4 + $0x1e8] sm:$0xff]
    %v206 = vld [vmem:[#allocation4 + $0x1f0] sm:$0xff]
    %v207 = vld [vmem:[#allocation4 + $0x1f8] sm:$0xff]
    %v208 = vld [vmem:[#allocation4 + $0x200] sm:$0xff]
    %v209 = vld [vmem:[#allocation4 + $0x208] sm:$0xff]
    %v210 = vld [vmem:[#allocation4 + $0x210] sm:$0xff]
    %v211 = vld [vmem:[#allocation4 + $0x218] sm:$0xff]
    %v212 = vld [vmem:[#allocation4 + $0x220] sm:$0xff]
    %v213 = vld [vmem:[#allocation4 + $0x228] sm:$0xff]
    %v214 = vld [vmem:[#allocation4 + $0x230] sm:$0xff]
    %v215 = vld [vmem:[#allocation4 + $0x238] sm:$0xff]
    %v216 = vld [vmem:[#allocation4 + $0x240] sm:$0xff]
    %v217 = vld [vmem:[#allocation4 + $0x248] sm:$0xff]
    %v218 = vld [vmem:[#allocation4 + $0x250] sm:$0xff]
    %v219 = vld [vmem:[#allocation4 + $0x258] sm:$0xff]
    %v220 = vld [vmem:[#allocation4 + $0x260] sm:$0xff]
    %v221 = vld [vmem:[#allocation4 + $0x268] sm:$0xff]
    %v222 = vld [vmem:[#allocation4 + $0x270] sm:$0xff]
    %v223 = vld [vmem:[#allocation4 + $0x278] sm:$0xff]
    %v224 = vld [vmem:[#allocation4 + $0x280] sm:$0xff]
    %v225 = vld [vmem:[#allocation4 + $0x288] sm:$0xff]
    %v226 = vld [vmem:[#allocation4 + $0x290] sm:$0xff]
    %v227 = vld [vmem:[#allocation4 + $0x298] sm:$0xff]
    %v228 = vld [vmem:[#allocation4 + $0x2a0] sm:$0xff]
    %v229 = vld [vmem:[#allocation4 + $0x2a8] sm:$0xff]
    %v230 = vld [vmem:[#allocation4 + $0x2b0] sm:$0xff]
    %v231 = vld [vmem:[#allocation4 + $0x2b8] sm:$0xff]
    %v232 = vld [vmem:[#allocation4 + $0x2c0] sm:$0xff]
    %v233 = vld [vmem:[#allocation4 + $0x2c8] sm:$0xff]
    %v234 = vld [vmem:[#allocation4 + $0x2d0] sm:$0xff]
    %v235 = vld [vmem:[#allocation4 + $0x2d8] sm:$0xff]
    %v236 = vld [vmem:[#allocation4 + $0x2e0] sm:$0xff]
    %v237 = vld [vmem:[#allocation4 + $0x2e8] sm:$0xff]
    %v238 = vld [vmem:[#allocation4 + $0x2f0] sm:$0xff]
    %v239 = vld [vmem:[#allocation4 + $0x2f8] sm:$0xff]
    %v240 = vld [vmem:[#allocation4 + $0x300] sm:$0xff]
    %v241 = vld [vmem:[#allocation4 + $0x308] sm:$0xff]
    %v242 = vld [vmem:[#allocation4 + $0x310] sm:$0xff]
    %v243 = vld [vmem:[#allocation4 + $0x318] sm:$0xff]
    %v244 = vld [vmem:[#allocation4 + $0x320] sm:$0xff]
    %v245 = vld [vmem:[#allocation4 + $0x328] sm:$0xff]
    %v246 = vld [vmem:[#allocation4 + $0x330] sm:$0xff]
    %v247 = vld [vmem:[#allocation4 + $0x338] sm:$0xff]
    %v248 = vld [vmem:[#allocation4 + $0x340] sm:$0xff]
    %v249 = vld [vmem:[#allocation4 + $0x348] sm:$0xff]
    %v250 = vld [vmem:[#allocation4 + $0x350] sm:$0xff]
    %v251 = vld [vmem:[#allocation4 + $0x358] sm:$0xff]
    %v252 = vld [vmem:[#allocation4 + $0x360] sm:$0xff]
    %v253 = vld [vmem:[#allocation4 + $0x368] sm:$0xff]
    %v254 = vld [vmem:[#allocation4 + $0x370] sm:$0xff]
    %v255 = vld [vmem:[#allocation4 + $0x378] sm:$0xff]
    %v256 = vld [vmem:[#allocation4 + $0x380] sm:$0xff]
    %v257 = vld [vmem:[#allocation4 + $0x388] sm:$0xff]
    %v258 = vld [vmem:[#allocation4 + $0x390] sm:$0xff]
    %v259 = vld [vmem:[#allocation4 + $0x398] sm:$0xff]
    %v260 = vld [vmem:[#allocation4 + $0x3a0] sm:$0xff]
    %v261 = vld [vmem:[#allocation4 + $0x3a8] sm:$0xff]
    %v262 = vld [vmem:[#allocation4 + $0x3b0] sm:$0xff]
    %v263 = vld [vmem:[#allocation4 + $0x3b8] sm:$0xff]
    %v264 = vld [vmem:[#allocation4 + $0x3c0] sm:$0xff]
    %v265 = vld [vmem:[#allocation4 + $0x3c8] sm:$0xff]
    %v266 = vld [vmem:[#allocation4 + $0x3d0] sm:$0xff]
    %v267 = vld [vmem:[#allocation4 + $0x3d8] sm:$0xff]
    %v268 = vld [vmem:[#allocation4 + $0x3e0] sm:$0xff]
    %v269 = vld [vmem:[#allocation4 + $0x3e8] sm:$0xff]
    %v270 = vld [vmem:[#allocation4 + $0x3f0] sm:$0xff]
    %v271 = vld [vmem:[#allocation4 + $0x3f8] sm:$0xff]
    %v272 = vld [vmem:[#allocation4 + $0x400] sm:$0xff]
    %v273 = vld [vmem:[#allocation4 + $0x408] sm:$0xff]
    %v274 = vld [vmem:[#allocation4 + $0x410] sm:$0xff]
    %v275 = vld [vmem:[#allocation4 + $0x418] sm:$0xff]
    %v276 = vld [vmem:[#allocation4 + $0x420] sm:$0xff]
    %v277 = vld [vmem:[#allocation4 + $0x428] sm:$0xff]
    %v278 = vld [vmem:[#allocation4 + $0x430] sm:$0xff]
    %v279 = vld [vmem:[#allocation4 + $0x438] sm:$0xff]
    %v280 = vld [vmem:[#allocation4 + $0x440] sm:$0xff]
    %v281 = vld [vmem:[#allocation4 + $0x448] sm:$0xff]
    %v282 = vld [vmem:[#allocation4 + $0x450] sm:$0xff]
    %v283 = vld [vmem:[#allocation4 + $0x458] sm:$0xff]
    %v284 = vld [vmem:[#allocation4 + $0x460] sm:$0xff]
    %v285 = vld [vmem:[#allocation4 + $0x468] sm:$0xff]
    %v286 = vld [vmem:[#allocation4 + $0x470] sm:$0xff]
    %v287 = vld [vmem:[#allocation4 + $0x478] sm:$0xff]
    %v288 = vld [vmem:[#allocation4 + $0x480] sm:$0xff]
    %v289 = vld [vmem:[#allocation4 + $0x488] sm:$0xff]
    %v290 = vld [vmem:[#allocation4 + $0x490] sm:$0xff]
    %v291 = vld [vmem:[#allocation4 + $0x498] sm:$0xff]
    %v292 = vld [vmem:[#allocation4 + $0x4a0] sm:$0xff]
    %v293 = vld [vmem:[#allocation4 + $0x4a8] sm:$0xff]
    %v294 = vld [vmem:[#allocation4 + $0x4b0] sm:$0xff]
    %v295 = vld [vmem:[#allocation4 + $0x4b8] sm:$0xff]
    %v296 = vld [vmem:[#allocation4 + $0x4c0] sm:$0xff]
    %v297 = vld [vmem:[#allocation4 + $0x4c8] sm:$0xff]
    %v298 = vld [vmem:[#allocation4 + $0x4d0] sm:$0xff]
    %v299 = vld [vmem:[#allocation4 + $0x4d8] sm:$0xff]
    %v300 = vld [vmem:[#allocation4 + $0x4e0] sm:$0xff]
    %v301 = vld [vmem:[#allocation4 + $0x4e8] sm:$0xff]
    %v302 = vld [vmem:[#allocation4 + $0x4f0] sm:$0xff]
    %v303 = vld [vmem:[#allocation4 + $0x4f8] sm:$0xff]
    %v304 = vld [vmem:[#allocation4 + $0x500] sm:$0xff]
    %v305 = vld [vmem:[#allocation4 + $0x508] sm:$0xff]
    %v306 = vld [vmem:[#allocation4 + $0x510] sm:$0xff]
    %v307 = vld [vmem:[#allocation4 + $0x518] sm:$0xff]
    %v308 = vld [vmem:[#allocation4 + $0x520] sm:$0xff]
    %v309 = vld [vmem:[#allocation4 + $0x528] sm:$0xff]
    %v310 = vld [vmem:[#allocation4 + $0x530] sm:$0xff]
    %v311 = vld [vmem:[#allocation4 + $0x538] sm:$0xff]
    %v312 = vld [vmem:[#allocation4 + $0x540] sm:$0xff]
    %v313 = vld [vmem:[#allocation4 + $0x548] sm:$0xff]
    %v314 = vld [vmem:[#allocation4 + $0x550] sm:$0xff]
    %v315 = vld [vmem:[#allocation4 + $0x558] sm:$0xff]
    %v316 = vld [vmem:[#allocation4 + $0x560] sm:$0xff]
    %v317 = vld [vmem:[#allocation4 + $0x568] sm:$0xff]
    %v318 = vld [vmem:[#allocation4 + $0x570] sm:$0xff]
    %v319 = vld [vmem:[#allocation4 + $0x578] sm:$0xff]
    %v320 = vld [vmem:[#allocation4 + $0x580] sm:$0xff]
    %v321 = vld [vmem:[#allocation4 + $0x588] sm:$0xff]
    %v322 = vld [vmem:[#allocation4 + $0x590] sm:$0xff]
    %v323 = vld [vmem:[#allocation4 + $0x598] sm:$0xff]
    %v324 = vld [vmem:[#allocation4 + $0x5a0] sm:$0xff]
    %v325 = vld [vmem:[#allocation4 + $0x5a8] sm:$0xff]
    %v326 = vld [vmem:[#allocation4 + $0x5b0] sm:$0xff]
    %v327 = vld [vmem:[#allocation4 + $0x5b8] sm:$0xff]
    %v328 = vld [vmem:[#allocation4 + $0x5c0] sm:$0xff]
    %v329 = vld [vmem:[#allocation4 + $0x5c8] sm:$0xff]
    %v330 = vld [vmem:[#allocation4 + $0x5d0] sm:$0xff]
    %v331 = vld [vmem:[#allocation4 + $0x5d8] sm:$0xff]
    %v332 = vld [vmem:[#allocation4 + $0x5e0] sm:$0xff]
    %v333 = vld [vmem:[#allocation4 + $0x5e8] sm:$0xff]
    %v334 = vld [vmem:[#allocation4 + $0x5f0] sm:$0xff]
    %v335 = vld [vmem:[#allocation4 + $0x5f8] sm:$0xff]
    %v336 = vld [vmem:[#allocation4 + $0x600] sm:$0xff]
    %v337 = vld [vmem:[#allocation4 + $0x608] sm:$0xff]
    %v338 = vld [vmem:[#allocation4 + $0x610] sm:$0xff]
    %v339 = vld [vmem:[#allocation4 + $0x618] sm:$0xff]
    %v340 = vld [vmem:[#allocation4 + $0x620] sm:$0xff]
    %v341 = vld [vmem:[#allocation4 + $0x628] sm:$0xff]
    %v342 = vld [vmem:[#allocation4 + $0x630] sm:$0xff]
    %v343 = vld [vmem:[#allocation4 + $0x638] sm:$0xff]
    %v344 = vld [vmem:[#allocation4 + $0x640] sm:$0xff]
    %v345 = vld [vmem:[#allocation4 + $0x648] sm:$0xff]
    %v346 = vld [vmem:[#allocation4 + $0x650] sm:$0xff]
    %v347 = vld [vmem:[#allocation4 + $0x658] sm:$0xff]
    %v348 = vld [vmem:[#allocation4 + $0x660] sm:$0xff]
    %v349 = vld [vmem:[#allocation4 + $0x668] sm:$0xff]
    %v350 = vld [vmem:[#allocation4 + $0x670] sm:$0xff]
    %v351 = vld [vmem:[#allocation4 + $0x678] sm:$0xff]
    %v352 = vld [vmem:[#allocation4 + $0x680] sm:$0xff]
    %v353 = vld [vmem:[#allocation4 + $0x688] sm:$0xff]
    %v354 = vld [vmem:[#allocation4 + $0x690] sm:$0xff]
    %v355 = vld [vmem:[#allocation4 + $0x698] sm:$0xff]
    %v356 = vld [vmem:[#allocation4 + $0x6a0] sm:$0xff]
    %v357 = vld [vmem:[#allocation4 + $0x6a8] sm:$0xff]
    %v358 = vld [vmem:[#allocation4 + $0x6b0] sm:$0xff]
    %v359 = vld [vmem:[#allocation4 + $0x6b8] sm:$0xff]
    %v360 = vld [vmem:[#allocation4 + $0x6c0] sm:$0xff]
    %v361 = vld [vmem:[#allocation4 + $0x6c8] sm:$0xff]
    %v362 = vld [vmem:[#allocation4 + $0x6d0] sm:$0xff]
    %v363 = vld [vmem:[#allocation4 + $0x6d8] sm:$0xff]
    %v364 = vld [vmem:[#allocation4 + $0x6e0] sm:$0xff]
    %v365 = vld [vmem:[#allocation4 + $0x6e8] sm:$0xff]
    %v366 = vld [vmem:[#allocation4 + $0x6f0] sm:$0xff]
    %v367 = vld [vmem:[#allocation4 + $0x6f8] sm:$0xff]
    %v368 = vld [vmem:[#allocation4 + $0x700] sm:$0xff]
    %v369 = vld [vmem:[#allocation4 + $0x708] sm:$0xff]
    %v370 = vld [vmem:[#allocation4 + $0x710] sm:$0xff]
    %v371 = vld [vmem:[#allocation4 + $0x718] sm:$0xff]
    %v372 = vld [vmem:[#allocation4 + $0x720] sm:$0xff]
    %v373 = vld [vmem:[#allocation4 + $0x728] sm:$0xff]
    %v374 = vld [vmem:[#allocation4 + $0x730] sm:$0xff]
    %v375 = vld [vmem:[#allocation4 + $0x738] sm:$0xff]
    %v376 = vld [vmem:[#allocation4 + $0x740] sm:$0xff]
    %v377 = vld [vmem:[#allocation4 + $0x748] sm:$0xff]
    %v378 = vld [vmem:[#allocation4 + $0x750] sm:$0xff]
    %v379 = vld [vmem:[#allocation4 + $0x758] sm:$0xff]
    %v380 = vld [vmem:[#allocation4 + $0x760] sm:$0xff]
    %v381 = vld [vmem:[#allocation4 + $0x768] sm:$0xff]
    %v382 = vld [vmem:[#allocation4 + $0x770] sm:$0xff]
    %v383 = vld [vmem:[#allocation4 + $0x778] sm:$0xff]
    %v384 = vld [vmem:[#allocation4 + $0x780] sm:$0xff]
    %v385 = vld [vmem:[#allocation4 + $0x788] sm:$0xff]
    %v386 = vld [vmem:[#allocation4 + $0x790] sm:$0xff]
    %v387 = vld [vmem:[#allocation4 + $0x798] sm:$0xff]
    %v388 = vld [vmem:[#allocation4 + $0x7a0] sm:$0xff]
    %v389 = vld [vmem:[#allocation4 + $0x7a8] sm:$0xff]
    %v390 = vld [vmem:[#allocation4 + $0x7b0] sm:$0xff]
    %v391 = vld [vmem:[#allocation4 + $0x7b8] sm:$0xff]
    %v392 = vld [vmem:[#allocation4 + $0x7c0] sm:$0xff]
    %v393 = vld [vmem:[#allocation4 + $0x7c8] sm:$0xff]
    %v394 = vld [vmem:[#allocation4 + $0x7d0] sm:$0xff]
    %v395 = vld [vmem:[#allocation4 + $0x7d8] sm:$0xff]
    %v396 = vld [vmem:[#allocation4 + $0x7e0] sm:$0xff]
    %v397 = vld [vmem:[#allocation4 + $0x7e8] sm:$0xff]
    %v398 = vld [vmem:[#allocation4 + $0x7f0] sm:$0xff]
    %v399 = vld [vmem:[#allocation4 + $0x7f8] sm:$0xff]
    %v400 = vld [vmem:[#allocation4 + $0x800] sm:$0xff]
    %v401 = vld [vmem:[#allocation4 + $0x808] sm:$0xff]
    %v402 = vld [vmem:[#allocation4 + $0x810] sm:$0xff]
    %v403 = vld [vmem:[#allocation4 + $0x818] sm:$0xff]
    %v404 = vld [vmem:[#allocation4 + $0x820] sm:$0xff]
    %v405 = vld [vmem:[#allocation4 + $0x828] sm:$0xff]
    %v406 = vld [vmem:[#allocation4 + $0x830] sm:$0xff]
    %v407 = vld [vmem:[#allocation4 + $0x838] sm:$0xff]
    %v408 = vld [vmem:[#allocation4 + $0x840] sm:$0xff]
    %v409 = vld [vmem:[#allocation4 + $0x848] sm:$0xff]
    %v410 = vld [vmem:[#allocation4 + $0x850] sm:$0xff]
    %v411 = vld [vmem:[#allocation4 + $0x858] sm:$0xff]
    %v412 = vld [vmem:[#allocation4 + $0x860] sm:$0xff]
    %v413 = vld [vmem:[#allocation4 + $0x868] sm:$0xff]
    %v414 = vld [vmem:[#allocation4 + $0x870] sm:$0xff]
    %v415 = vld [vmem:[#allocation4 + $0x878] sm:$0xff]
    %v416 = vld [vmem:[#allocation4 + $0x880] sm:$0xff]
    %v417 = vld [vmem:[#allocation4 + $0x888] sm:$0xff]
    %v418 = vld [vmem:[#allocation4 + $0x890] sm:$0xff]
    %v419 = vld [vmem:[#allocation4 + $0x898] sm:$0xff]
    %v420 = vld [vmem:[#allocation4 + $0x8a0] sm:$0xff]
    %v421 = vld [vmem:[#allocation4 + $0x8a8] sm:$0xff]
    %v422 = vld [vmem:[#allocation4 + $0x8b0] sm:$0xff]
    %v423 = vld [vmem:[#allocation4 + $0x8b8] sm:$0xff]
    %v424 = vld [vmem:[#allocation4 + $0x8c0] sm:$0xff]
    %v425 = vld [vmem:[#allocation4 + $0x8c8] sm:$0xff]
    %v426 = vld [vmem:[#allocation4 + $0x8d0] sm:$0xff]
    %v427 = vld [vmem:[#allocation4 + $0x8d8] sm:$0xff]
    %v428 = vld [vmem:[#allocation4 + $0x8e0] sm:$0xff]
    %v429 = vld [vmem:[#allocation4 + $0x8e8] sm:$0xff]
    %v430 = vld [vmem:[#allocation4 + $0x8f0] sm:$0xff]
    %v431 = vld [vmem:[#allocation4 + $0x8f8] sm:$0xff]
    %v432 = vld [vmem:[#allocation4 + $0x900] sm:$0xff]
    %v433 = vld [vmem:[#allocation4 + $0x908] sm:$0xff]
    %v434 = vld [vmem:[#allocation4 + $0x910] sm:$0xff]
    %v435 = vld [vmem:[#allocation4 + $0x918] sm:$0xff]
    %v436 = vld [vmem:[#allocation4 + $0x920] sm:$0xff]
    %v437 = vld [vmem:[#allocation4 + $0x928] sm:$0xff]
    %v438 = vld [vmem:[#allocation4 + $0x930] sm:$0xff]
    %v439 = vld [vmem:[#allocation4 + $0x938] sm:$0xff]
    %v440 = vld [vmem:[#allocation4 + $0x940] sm:$0xff]
    %v441 = vld [vmem:[#allocation4 + $0x948] sm:$0xff]
    %v442 = vld [vmem:[#allocation4 + $0x950] sm:$0xff]
    %v443 = vld [vmem:[#allocation4 + $0x958] sm:$0xff]
    %v444 = vld [vmem:[#allocation4 + $0x960] sm:$0xff]
    %v445 = vld [vmem:[#allocation4 + $0x968] sm:$0xff]
    %v446 = vld [vmem:[#allocation4 + $0x970] sm:$0xff]
    %v447 = vld [vmem:[#allocation4 + $0x978] sm:$0xff]
    %v448 = vld [vmem:[#allocation4 + $0x980] sm:$0xff]
    %v449 = vld [vmem:[#allocation4 + $0x988] sm:$0xff]
    %v450 = vld [vmem:[#allocation4 + $0x990] sm:$0xff]
    %v451 = vld [vmem:[#allocation4 + $0x998] sm:$0xff]
    %v452 = vld [vmem:[#allocation4 + $0x9a0] sm:$0xff]
    %v453 = vld [vmem:[#allocation4 + $0x9a8] sm:$0xff]
    %v454 = vld [vmem:[#allocation4 + $0x9b0] sm:$0xff]
    %v455 = vld [vmem:[#allocation4 + $0x9b8] sm:$0xff]
    %v456 = vld [vmem:[#allocation4 + $0x9c0] sm:$0xff]
    %v457 = vld [vmem:[#allocation4 + $0x9c8] sm:$0xff]
    %v458 = vld [vmem:[#allocation4 + $0x9d0] sm:$0xff]
    %v459 = vld [vmem:[#allocation4 + $0x9d8] sm:$0xff]
    %v460 = vld [vmem:[#allocation4 + $0x9e0] sm:$0xff]
    %v461 = vld [vmem:[#allocation4 + $0x9e8] sm:$0xff]
    %v462 = vld [vmem:[#allocation4 + $0x9f0] sm:$0xff]
    %v463 = vld [vmem:[#allocation4 + $0x9f8] sm:$0xff]
    %v464 = vld [vmem:[#allocation4 + $0xa00] sm:$0xff]
    %v465 = vld [vmem:[#allocation4 + $0xa08] sm:$0xff]
    %v466 = vld [vmem:[#allocation4 + $0xa10] sm:$0xff]
    %v467 = vld [vmem:[#allocation4 + $0xa18] sm:$0xff]
    %v468 = vld [vmem:[#allocation4 + $0xa20] sm:$0xff]
    %v469 = vld [vmem:[#allocation4 + $0xa28] sm:$0xff]
    %v470 = vld [vmem:[#allocation4 + $0xa30] sm:$0xff]
    %v471 = vld [vmem:[#allocation4 + $0xa38] sm:$0xff]
    %v472 = vld [vmem:[#allocation4 + $0xa40] sm:$0xff]
    %v473 = vld [vmem:[#allocation4 + $0xa48] sm:$0xff]
    %v474 = vld [vmem:[#allocation4 + $0xa50] sm:$0xff]
    %v475 = vld [vmem:[#allocation4 + $0xa58] sm:$0xff]
    %v476 = vld [vmem:[#allocation4 + $0xa60] sm:$0xff]
    %v477 = vld [vmem:[#allocation4 + $0xa68] sm:$0xff]
    %v478 = vld [vmem:[#allocation4 + $0xa70] sm:$0xff]
    %v479 = vld [vmem:[#allocation4 + $0xa78] sm:$0xff]
    %v480 = vld [vmem:[#allocation4 + $0xa80] sm:$0xff]
    %v481 = vld [vmem:[#allocation4 + $0xa88] sm:$0xff]
    %v482 = vld [vmem:[#allocation4 + $0xa90] sm:$0xff]
    %v483 = vld [vmem:[#allocation4 + $0xa98] sm:$0xff]
    %v484 = vld [vmem:[#allocation4 + $0xaa0] sm:$0xff]
    %v485 = vld [vmem:[#allocation4 + $0xaa8] sm:$0xff]
    %v486 = vld [vmem:[#allocation4 + $0xab0] sm:$0xff]
    %v487 = vld [vmem:[#allocation4 + $0xab8] sm:$0xff]
    %v488 = vld [vmem:[#allocation4 + $0xac0] sm:$0xff]
    %v489 = vld [vmem:[#allocation4 + $0xac8] sm:$0xff]
    %v490 = vld [vmem:[#allocation4 + $0xad0] sm:$0xff]
    %v491 = vld [vmem:[#allocation4 + $0xad8] sm:$0xff]
    %v492 = vld [vmem:[#allocation4 + $0xae0] sm:$0xff]
    %v493 = vld [vmem:[#allocation4 + $0xae8] sm:$0xff]
    %v494 = vld [vmem:[#allocation4 + $0xaf0] sm:$0xff]
    %v495 = vld [vmem:[#allocation4 + $0xaf8] sm:$0xff]
    %v496 = vld [vmem:[#allocation4 + $0xb00] sm:$0xff]
    %v497 = vld [vmem:[#allocation4 + $0xb08] sm:$0xff]
    %v498 = vld [vmem:[#allocation4 + $0xb10] sm:$0xff]
    %v499 = vld [vmem:[#allocation4 + $0xb18] sm:$0xff]
    %v500 = vld [vmem:[#allocation4 + $0xb20] sm:$0xff]
    %v501 = vld [vmem:[#allocation4 + $0xb28] sm:$0xff]
    %v502 = vld [vmem:[#allocation4 + $0xb30] sm:$0xff]
    %v503 = vld [vmem:[#allocation4 + $0xb38] sm:$0xff]
    %v504 = vld [vmem:[#allocation4 + $0xb40] sm:$0xff]
    %v505 = vld [vmem:[#allocation4 + $0xb48] sm:$0xff]
    %v506 = vld [vmem:[#allocation4 + $0xb50] sm:$0xff]
    %v507 = vld [vmem:[#allocation4 + $0xb58] sm:$0xff]
    %v508 = vld [vmem:[#allocation4 + $0xb60] sm:$0xff]
    %v509 = vld [vmem:[#allocation4 + $0xb68] sm:$0xff]
    %v510 = vld [vmem:[#allocation4 + $0xb70] sm:$0xff]
    %v511 = vld [vmem:[#allocation4 + $0xb78] sm:$0xff]
    %v512 = vld [vmem:[#allocation4 + $0xb80] sm:$0xff]
    %v513 = vld [vmem:[#allocation4 + $0xb88] sm:$0xff]
    %v514 = vld [vmem:[#allocation4 + $0xb90] sm:$0xff]
    %v515 = vld [vmem:[#allocation4 + $0xb98] sm:$0xff]
    %v516 = vld [vmem:[#allocation4 + $0xba0] sm:$0xff]
    %v517 = vld [vmem:[#allocation4 + $0xba8] sm:$0xff]
    %v518 = vld [vmem:[#allocation4 + $0xbb0] sm:$0xff]
    %v519 = vld [vmem:[#allocation4 + $0xbb8] sm:$0xff]
    %v520 = vld [vmem:[#allocation4 + $0xbc0] sm:$0xff]
    %v521 = vld [vmem:[#allocation4 + $0xbc8] sm:$0xff]
    %v522 = vld [vmem:[#allocation4 + $0xbd0] sm:$0xff]
    %v523 = vld [vmem:[#allocation4 + $0xbd8] sm:$0xff]
    %v524 = vld [vmem:[#allocation4 + $0xbe0] sm:$0xff]
    %v525 = vld [vmem:[#allocation4 + $0xbe8] sm:$0xff]
    %v526 = vld [vmem:[#allocation4 + $0xbf0] sm:$0xff]
    %v527 = vld [vmem:[#allocation4 + $0xbf8] sm:$0xff]
    %v528 = vld [vmem:[#allocation4 + $0xc00] sm:$0xff]
    %v529 = vld [vmem:[#allocation4 + $0xc08] sm:$0xff]
    %v530 = vld [vmem:[#allocation4 + $0xc10] sm:$0xff]
    %v531 = vld [vmem:[#allocation4 + $0xc18] sm:$0xff]
    %v532 = vld [vmem:[#allocation4 + $0xc20] sm:$0xff]
    %v533 = vld [vmem:[#allocation4 + $0xc28] sm:$0xff]
    %v534 = vld [vmem:[#allocation4 + $0xc30] sm:$0xff]
    %v535 = vld [vmem:[#allocation4 + $0xc38] sm:$0xff]
    %v536 = vld [vmem:[#allocation4 + $0xc40] sm:$0xff]
    %v537 = vld [vmem:[#allocation4 + $0xc48] sm:$0xff]
    %v538 = vld [vmem:[#allocation4 + $0xc50] sm:$0xff]
    %v539 = vld [vmem:[#allocation4 + $0xc58] sm:$0xff]
    %v540 = vld [vmem:[#allocation4 + $0xc60] sm:$0xff]
    %v541 = vld [vmem:[#allocation4 + $0xc68] sm:$0xff]
    %v542 = vld [vmem:[#allocation4 + $0xc70] sm:$0xff]
    %v543 = vld [vmem:[#allocation4 + $0xc78] sm:$0xff]
    %v544 = vld [vmem:[#allocation4 + $0xc80] sm:$0xff]
    %v545 = vld [vmem:[#allocation4 + $0xc88] sm:$0xff]
    %v546 = vld [vmem:[#allocation4 + $0xc90] sm:$0xff]
    %v547 = vld [vmem:[#allocation4 + $0xc98] sm:$0xff]
    %v548 = vld [vmem:[#allocation4 + $0xca0] sm:$0xff]
    %v549 = vld [vmem:[#allocation4 + $0xca8] sm:$0xff]
    %v550 = vld [vmem:[#allocation4 + $0xcb0] sm:$0xff]
    %v551 = vld [vmem:[#allocation4 + $0xcb8] sm:$0xff]
    %v552 = vld [vmem:[#allocation4 + $0xcc0] sm:$0xff]
    %v553 = vld [vmem:[#allocation4 + $0xcc8] sm:$0xff]
    %v554 = vld [vmem:[#allocation4 + $0xcd0] sm:$0xff]
    %v555 = vld [vmem:[#allocation4 + $0xcd8] sm:$0xff]
    %v556 = vld [vmem:[#allocation4 + $0xce0] sm:$0xff]
    %v557 = vld [vmem:[#allocation4 + $0xce8] sm:$0xff]
    %v558 = vld [vmem:[#allocation4 + $0xcf0] sm:$0xff]
    %v559 = vld [vmem:[#allocation4 + $0xcf8] sm:$0xff]
    %v560 = vld [vmem:[#allocation4 + $0xd00] sm:$0xff]
    %v561 = vld [vmem:[#allocation4 + $0xd08] sm:$0xff]
    %v562 = vld [vmem:[#allocation4 + $0xd10] sm:$0xff]
    %v563 = vld [vmem:[#allocation4 + $0xd18] sm:$0xff]
    %v564 = vld [vmem:[#allocation4 + $0xd20] sm:$0xff]
    %v565 = vld [vmem:[#allocation4 + $0xd28] sm:$0xff]
    %v566 = vld [vmem:[#allocation4 + $0xd30] sm:$0xff]
    %v567 = vld [vmem:[#allocation4 + $0xd38] sm:$0xff]
    %v568 = vld [vmem:[#allocation4 + $0xd40] sm:$0xff]
    %v569 = vld [vmem:[#allocation4 + $0xd48] sm:$0xff]
    %v570 = vld [vmem:[#allocation4 + $0xd50] sm:$0xff]
    %v571 = vld [vmem:[#allocation4 + $0xd58] sm:$0xff]
    %v572 = vld [vmem:[#allocation4 + $0xd60] sm:$0xff]
    %v573 = vld [vmem:[#allocation4 + $0xd68] sm:$0xff]
    %v574 = vld [vmem:[#allocation4 + $0xd70] sm:$0xff]
    %v575 = vld [vmem:[#allocation4 + $0xd78] sm:$0xff]
    %v576 = vld [vmem:[#allocation4 + $0xd80] sm:$0xff]
    %v577 = vld [vmem:[#allocation4 + $0xd88] sm:$0xff]
    %v578 = vld [vmem:[#allocation4 + $0xd90] sm:$0xff]
    %v579 = vld [vmem:[#allocation4 + $0xd98] sm:$0xff]
    %v580 = vld [vmem:[#allocation4 + $0xda0] sm:$0xff]
    %v581 = vld [vmem:[#allocation4 + $0xda8] sm:$0xff]
    %v582 = vld [vmem:[#allocation4 + $0xdb0] sm:$0xff]
    %v583 = vld [vmem:[#allocation4 + $0xdb8] sm:$0xff]
    %v584 = vld [vmem:[#allocation4 + $0xdc0] sm:$0xff]
    %v585 = vld [vmem:[#allocation4 + $0xdc8] sm:$0xff]
    %v586 = vld [vmem:[#allocation4 + $0xdd0] sm:$0xff]
    %v587 = vld [vmem:[#allocation4 + $0xdd8] sm:$0xff]
    %v588 = vld [vmem:[#allocation4 + $0xde0] sm:$0xff]
    %v589 = vld [vmem:[#allocation4 + $0xde8] sm:$0xff]
    %v590 = vld [vmem:[#allocation4 + $0xdf0] sm:$0xff]
    %v591 = vld [vmem:[#allocation4 + $0xdf8] sm:$0xff]
    %v592 = vld [vmem:[#allocation4 + $0xe00] sm:$0xff]
    %v593 = vld [vmem:[#allocation4 + $0xe08] sm:$0xff]
    %v594 = vld [vmem:[#allocation4 + $0xe10] sm:$0xff]
    %v595 = vld [vmem:[#allocation4 + $0xe18] sm:$0xff]
    %v596 = vld [vmem:[#allocation4 + $0xe20] sm:$0xff]
    %v597 = vld [vmem:[#allocation4 + $0xe28] sm:$0xff]
    %v598 = vld [vmem:[#allocation4 + $0xe30] sm:$0xff]
    %v599 = vld [vmem:[#allocation4 + $0xe38] sm:$0xff]
    %v600 = vld [vmem:[#allocation4 + $0xe40] sm:$0xff]
    %v601 = vld [vmem:[#allocation4 + $0xe48] sm:$0xff]
    %v602 = vld [vmem:[#allocation4 + $0xe50] sm:$0xff]
    %v603 = vld [vmem:[#allocation4 + $0xe58] sm:$0xff]
    %v604 = vld [vmem:[#allocation4 + $0xe60] sm:$0xff]
    %v605 = vld [vmem:[#allocation4 + $0xe68] sm:$0xff]
    %v606 = vld [vmem:[#allocation4 + $0xe70] sm:$0xff]
    %v607 = vld [vmem:[#allocation4 + $0xe78] sm:$0xff]
    %v608 = vld [vmem:[#allocation4 + $0xe80] sm:$0xff]
    %v609 = vld [vmem:[#allocation4 + $0xe88] sm:$0xff]
    %v610 = vld [vmem:[#allocation4 + $0xe90] sm:$0xff]
    %v611 = vld [vmem:[#allocation4 + $0xe98] sm:$0xff]
    %v612 = vld [vmem:[#allocation4 + $0xea0] sm:$0xff]
    %v613 = vld [vmem:[#allocation4 + $0xea8] sm:$0xff]
    %v614 = vld [vmem:[#allocation4 + $0xeb0] sm:$0xff]
    %v615 = vld [vmem:[#allocation4 + $0xeb8] sm:$0xff]
    %v616 = vld [vmem:[#allocation4 + $0xec0] sm:$0xff]
    %v617 = vld [vmem:[#allocation4 + $0xec8] sm:$0xff]
    %v618 = vld [vmem:[#allocation4 + $0xed0] sm:$0xff]
    %v619 = vld [vmem:[#allocation4 + $0xed8] sm:$0xff]
    %v620 = vld [vmem:[#allocation4 + $0xee0] sm:$0xff]
    %v621 = vld [vmem:[#allocation4 + $0xee8] sm:$0xff]
    %v622 = vld [vmem:[#allocation4 + $0xef0] sm:$0xff]
    %v623 = vld [vmem:[#allocation4 + $0xef8] sm:$0xff]
    %v624 = vld [vmem:[#allocation4 + $0xf00] sm:$0xff]
    %v625 = vld [vmem:[#allocation4 + $0xf08] sm:$0xff]
    %v626 = vld [vmem:[#allocation4 + $0xf10] sm:$0xff]
    %v627 = vld [vmem:[#allocation4 + $0xf18] sm:$0xff]
    %v628 = vld [vmem:[#allocation4 + $0xf20] sm:$0xff]
    %v629 = vld [vmem:[#allocation4 + $0xf28] sm:$0xff]
    %v630 = vld [vmem:[#allocation4 + $0xf30] sm:$0xff]
    %v631 = vld [vmem:[#allocation4 + $0xf38] sm:$0xff]
    %v632 = vld [vmem:[#allocation4 + $0xf40] sm:$0xff]
    %v633 = vld [vmem:[#allocation4 + $0xf48] sm:$0xff]
    %v634 = vld [vmem:[#allocation4 + $0xf50] sm:$0xff]
    %v635 = vld [vmem:[#allocation4 + $0xf58] sm:$0xff]
    %v636 = vld [vmem:[#allocation4 + $0xf60] sm:$0xff]
    %v637 = vld [vmem:[#allocation4 + $0xf68] sm:$0xff]
    %v638 = vld [vmem:[#allocation4 + $0xf70] sm:$0xff]
    %v639 = vld [vmem:[#allocation4 + $0xf78] sm:$0xff]
    %v640 = vld [vmem:[#allocation4 + $0xf80] sm:$0xff]
    %v641 = vld [vmem:[#allocation4 + $0xf88] sm:$0xff]
    %v642 = vld [vmem:[#allocation4 + $0xf90] sm:$0xff]
    %v643 = vld [vmem:[#allocation4 + $0xf98] sm:$0xff]
    %v644 = vld [vmem:[#allocation4 + $0xfa0] sm:$0xff]
    %v645 = vld [vmem:[#allocation4 + $0xfa8] sm:$0xff]
    %v646 = vld [vmem:[#allocation4 + $0xfb0] sm:$0xff]
    %v647 = vld [vmem:[#allocation4 + $0xfb8] sm:$0xff]
    %v648 = vld [vmem:[#allocation4 + $0xfc0] sm:$0xff]
    %v649 = vld [vmem:[#allocation4 + $0xfc8] sm:$0xff]
    %v650 = vld [vmem:[#allocation4 + $0xfd0] sm:$0xff]
    %v651 = vld [vmem:[#allocation4 + $0xfd8] sm:$0xff]
    %v652 = vld [vmem:[#allocation4 + $0xfe0] sm:$0xff]
    %v653 = vld [vmem:[#allocation4 + $0xfe8] sm:$0xff]
    %v654 = vld [vmem:[#allocation4 + $0xff0] sm:$0xff]
    %v655 = vld [vmem:[#allocation4 + $0xff8] sm:$0xff]
    %v656 = vld [vmem:[#allocation4 + $0x1000] sm:$0xff]
    %v657 = vld [vmem:[#allocation4 + $0x1008] sm:$0xff]
    %v658 = vld [vmem:[#allocation4 + $0x1010] sm:$0xff]
    %v659 = vld [vmem:[#allocation4 + $0x1018] sm:$0xff]
    %v660 = vld [vmem:[#allocation4 + $0x1020] sm:$0xff]
    %v661 = vld [vmem:[#allocation4 + $0x1028] sm:$0xff]
    %v662 = vld [vmem:[#allocation4 + $0x1030] sm:$0xff]
    %v663 = vld [vmem:[#allocation4 + $0x1038] sm:$0xff]
    %v664 = vld [vmem:[#allocation4 + $0x1040] sm:$0xff]
    %v665 = vld [vmem:[#allocation4 + $0x1048] sm:$0xff]
    %v666 = vld [vmem:[#allocation4 + $0x1050] sm:$0xff]
    %v667 = vld [vmem:[#allocation4 + $0x1058] sm:$0xff]
    %v668 = vld [vmem:[#allocation4 + $0x1060] sm:$0xff]
    %v669 = vld [vmem:[#allocation4 + $0x1068] sm:$0xff]
    %v670 = vld [vmem:[#allocation4 + $0x1070] sm:$0xff]
    %v671 = vld [vmem:[#allocation4 + $0x1078] sm:$0xff]
    %v672 = vld [vmem:[#allocation4 + $0x1080] sm:$0xff]
    %v673 = vld [vmem:[#allocation4 + $0x1088] sm:$0xff]
    %v674 = vld [vmem:[#allocation4 + $0x1090] sm:$0xff]
    %v675 = vld [vmem:[#allocation4 + $0x1098] sm:$0xff]
    %v676 = vld [vmem:[#allocation4 + $0x10a0] sm:$0xff]
    %v677 = vld [vmem:[#allocation4 + $0x10a8] sm:$0xff]
    %v678 = vld [vmem:[#allocation4 + $0x10b0] sm:$0xff]
    %v679 = vld [vmem:[#allocation4 + $0x10b8] sm:$0xff]
    %v680 = vld [vmem:[#allocation4 + $0x10c0] sm:$0xff]
    %v681 = vld [vmem:[#allocation4 + $0x10c8] sm:$0xff]
    %v682 = vld [vmem:[#allocation4 + $0x10d0] sm:$0xff]
    %v683 = vld [vmem:[#allocation4 + $0x10d8] sm:$0xff]
    %v684 = vld [vmem:[#allocation4 + $0x10e0] sm:$0xff]
    %v685 = vld [vmem:[#allocation4 + $0x10e8] sm:$0xff]
    %v686 = vld [vmem:[#allocation4 + $0x10f0] sm:$0xff]
    %v687 = vld [vmem:[#allocation4 + $0x10f8] sm:$0xff]
    %v688 = vld [vmem:[#allocation4 + $0x1100] sm:$0xff]
    %v689 = vld [vmem:[#allocation4 + $0x1108] sm:$0xff]
    %v690 = vld [vmem:[#allocation4 + $0x1110] sm:$0xff]
    %v691 = vld [vmem:[#allocation4 + $0x1118] sm:$0xff]
    %v692 = vld [vmem:[#allocation4 + $0x1120] sm:$0xff]
    %v693 = vld [vmem:[#allocation4 + $0x1128] sm:$0xff]
    %v694 = vld [vmem:[#allocation4 + $0x1130] sm:$0xff]
    %v695 = vld [vmem:[#allocation4 + $0x1138] sm:$0xff]
    %v696 = vld [vmem:[#allocation4 + $0x1140] sm:$0xff]
    %v697 = vld [vmem:[#allocation4 + $0x1148] sm:$0xff]
    %v698 = vld [vmem:[#allocation4 + $0x1150] sm:$0xff]
    %v699 = vld [vmem:[#allocation4 + $0x1158] sm:$0xff]
    %v700 = vld [vmem:[#allocation4 + $0x1160] sm:$0xff]
    %v701 = vld [vmem:[#allocation4 + $0x1168] sm:$0xff]
    %v702 = vld [vmem:[#allocation4 + $0x1170] sm:$0xff]
    %v703 = vld [vmem:[#allocation4 + $0x1178] sm:$0xff]
    %v704 = vld [vmem:[#allocation4 + $0x1180] sm:$0xff]
    %v705 = vld [vmem:[#allocation4 + $0x1188] sm:$0xff]
    %v706 = vld [vmem:[#allocation4 + $0x1190] sm:$0xff]
    %v707 = vld [vmem:[#allocation4 + $0x1198] sm:$0xff]
    %v708 = vld [vmem:[#allocation4 + $0x11a0] sm:$0xff]
    %v709 = vld [vmem:[#allocation4 + $0x11a8] sm:$0xff]
    %v710 = vld [vmem:[#allocation4 + $0x11b0] sm:$0xff]
    %v711 = vld [vmem:[#allocation4 + $0x11b8] sm:$0xff]
    %v712 = vld [vmem:[#allocation4 + $0x11c0] sm:$0xff]
    %v713 = vld [vmem:[#allocation4 + $0x11c8] sm:$0xff]
    %v714 = vld [vmem:[#allocation4 + $0x11d0] sm:$0xff]
    %v715 = vld [vmem:[#allocation4 + $0x11d8] sm:$0xff]
    %v716 = vld [vmem:[#allocation4 + $0x11e0] sm:$0xff]
    %v717 = vld [vmem:[#allocation4 + $0x11e8] sm:$0xff]
    %v718 = vld [vmem:[#allocation4 + $0x11f0] sm:$0xff]
    %v719 = vld [vmem:[#allocation4 + $0x11f8] sm:$0xff]
    %v720 = vld [vmem:[#allocation4 + $0x1200] sm:$0xff]
    %v721 = vld [vmem:[#allocation4 + $0x1208] sm:$0xff]
    %v722 = vld [vmem:[#allocation4 + $0x1210] sm:$0xff]
    %v723 = vld [vmem:[#allocation4 + $0x1218] sm:$0xff]
    %v724 = vld [vmem:[#allocation4 + $0x1220] sm:$0xff]
    %v725 = vld [vmem:[#allocation4 + $0x1228] sm:$0xff]
    %v726 = vld [vmem:[#allocation4 + $0x1230] sm:$0xff]
    %v727 = vld [vmem:[#allocation4 + $0x1238] sm:$0xff]
    %v728 = vld [vmem:[#allocation4 + $0x1240] sm:$0xff]
    %v729 = vld [vmem:[#allocation4 + $0x1248] sm:$0xff]
    %v730 = vld [vmem:[#allocation4 + $0x1250] sm:$0xff]
    %v731 = vld [vmem:[#allocation4 + $0x1258] sm:$0xff]
    %v732 = vld [vmem:[#allocation4 + $0x1260] sm:$0xff]
    %v733 = vld [vmem:[#allocation4 + $0x1268] sm:$0xff]
    %v734 = vld [vmem:[#allocation4 + $0x1270] sm:$0xff]
    %v735 = vld [vmem:[#allocation4 + $0x1278] sm:$0xff]
    %v736 = vld [vmem:[#allocation4 + $0x1280] sm:$0xff]
    %v737 = vld [vmem:[#allocation4 + $0x1288] sm:$0xff]
    %v738 = vld [vmem:[#allocation4 + $0x1290] sm:$0xff]
    %v739 = vld [vmem:[#allocation4 + $0x1298] sm:$0xff]
    %v740 = vld [vmem:[#allocation4 + $0x12a0] sm:$0xff]
    %v741 = vld [vmem:[#allocation4 + $0x12a8] sm:$0xff]
    %v742 = vld [vmem:[#allocation4 + $0x12b0] sm:$0xff]
    %v743 = vld [vmem:[#allocation4 + $0x12b8] sm:$0xff]
    %v744 = vld [vmem:[#allocation4 + $0x12c0] sm:$0xff]
    %v745 = vld [vmem:[#allocation4 + $0x12c8] sm:$0xff]
    %v746 = vld [vmem:[#allocation4 + $0x12d0] sm:$0xff]
    %v747 = vld [vmem:[#allocation4 + $0x12d8] sm:$0xff]
    %v748 = vld [vmem:[#allocation4 + $0x12e0] sm:$0xff]
    %v749 = vld [vmem:[#allocation4 + $0x12e8] sm:$0xff]
    %v750 = vld [vmem:[#allocation4 + $0x12f0] sm:$0xff]
    %v751 = vld [vmem:[#allocation4 + $0x12f8] sm:$0xff]
    %v752 = vld [vmem:[#allocation4 + $0x1300] sm:$0xff]
    %v753 = vld [vmem:[#allocation4 + $0x1308] sm:$0xff]
    %v754 = vld [vmem:[#allocation4 + $0x1310] sm:$0xff]
    %v755 = vld [vmem:[#allocation4 + $0x1318] sm:$0xff]
    %v756 = vld [vmem:[#allocation4 + $0x1320] sm:$0xff]
    %v757 = vld [vmem:[#allocation4 + $0x1328] sm:$0xff]
    %v758 = vld [vmem:[#allocation4 + $0x1330] sm:$0xff]
    %v759 = vld [vmem:[#allocation4 + $0x1338] sm:$0xff]
    %v760 = vld [vmem:[#allocation4 + $0x1340] sm:$0xff]
    %v761 = vld [vmem:[#allocation4 + $0x1348] sm:$0xff]
    %v762 = vld [vmem:[#allocation4 + $0x1350] sm:$0xff]
    %v763 = vld [vmem:[#allocation4 + $0x1358] sm:$0xff]
    %v764 = vld [vmem:[#allocation4 + $0x1360] sm:$0xff]
    %v765 = vld [vmem:[#allocation4 + $0x1368] sm:$0xff]
    %v766 = vld [vmem:[#allocation4 + $0x1370] sm:$0xff]
    %v767 = vld [vmem:[#allocation4 + $0x1378] sm:$0xff]
    %v768 = vld [vmem:[#allocation4 + $0x1380] sm:$0xff]
    %v769 = vld [vmem:[#allocation4 + $0x1388] sm:$0xff]
    %v770 = vld [vmem:[#allocation4 + $0x1390] sm:$0xff]
    %v771 = vld [vmem:[#allocation4 + $0x1398] sm:$0xff]
    %v772 = vld [vmem:[#allocation4 + $0x13a0] sm:$0xff]
    %v773 = vld [vmem:[#allocation4 + $0x13a8] sm:$0xff]
    %v774 = vld [vmem:[#allocation4 + $0x13b0] sm:$0xff]
    %v775 = vld [vmem:[#allocation4 + $0x13b8] sm:$0xff]
    %v776 = vld [vmem:[#allocation4 + $0x13c0] sm:$0xff]
    %v777 = vld [vmem:[#allocation4 + $0x13c8] sm:$0xff]
    %v778 = vld [vmem:[#allocation4 + $0x13d0] sm:$0xff]
    %v779 = vld [vmem:[#allocation4 + $0x13d8] sm:$0xff]
    %v780 = vld [vmem:[#allocation4 + $0x13e0] sm:$0xff]
    %v781 = vld [vmem:[#allocation4 + $0x13e8] sm:$0xff]
    %v782 = vld [vmem:[#allocation4 + $0x13f0] sm:$0xff]
    %v783 = vld [vmem:[#allocation4 + $0x13f8] sm:$0xff]
    %v784 = vld [vmem:[#allocation4 + $0x1400] sm:$0xff]
    %v785 = vld [vmem:[#allocation4 + $0x1408] sm:$0xff]
    %v786 = vld [vmem:[#allocation4 + $0x1410] sm:$0xff]
    %v787 = vld [vmem:[#allocation4 + $0x1418] sm:$0xff]
    %v788 = vld [vmem:[#allocation4 + $0x1420] sm:$0xff]
    %v789 = vld [vmem:[#allocation4 + $0x1428] sm:$0xff]
    %v790 = vld [vmem:[#allocation4 + $0x1430] sm:$0xff]
    %v791 = vld [vmem:[#allocation4 + $0x1438] sm:$0xff]
    %v792 = vld [vmem:[#allocation4 + $0x1440] sm:$0xff]
    %v793 = vld [vmem:[#allocation4 + $0x1448] sm:$0xff]
    %v794 = vld [vmem:[#allocation4 + $0x1450] sm:$0xff]
    %v795 = vld [vmem:[#allocation4 + $0x1458] sm:$0xff]
    %v796 = vld [vmem:[#allocation4 + $0x1460] sm:$0xff]
    %v797 = vld [vmem:[#allocation4 + $0x1468] sm:$0xff]
    %v798 = vld [vmem:[#allocation4 + $0x1470] sm:$0xff]
    %v799 = vld [vmem:[#allocation4 + $0x1478] sm:$0xff]
    %v800 = vld [vmem:[#allocation4 + $0x1480] sm:$0xff]
    %v801 = vld [vmem:[#allocation4 + $0x1488] sm:$0xff]
    %v802 = vld [vmem:[#allocation4 + $0x1490] sm:$0xff]
    %v803 = vld [vmem:[#allocation4 + $0x1498] sm:$0xff]
    %v804 = vld [vmem:[#allocation4 + $0x14a0] sm:$0xff]
    %v805 = vld [vmem:[#allocation4 + $0x14a8] sm:$0xff]
    %v806 = vld [vmem:[#allocation4 + $0x14b0] sm:$0xff]
    %v807 = vld [vmem:[#allocation4 + $0x14b8] sm:$0xff]
    %v808 = vld [vmem:[#allocation4 + $0x14c0] sm:$0xff]
    %v809 = vld [vmem:[#allocation4 + $0x14c8] sm:$0xff]
    %v810 = vld [vmem:[#allocation4 + $0x14d0] sm:$0xff]
    %v811 = vld [vmem:[#allocation4 + $0x14d8] sm:$0xff]
    %v812 = vld [vmem:[#allocation4 + $0x14e0] sm:$0xff]
    %v813 = vld [vmem:[#allocation4 + $0x14e8] sm:$0xff]
    %v814 = vld [vmem:[#allocation4 + $0x14f0] sm:$0xff]
    %v815 = vld [vmem:[#allocation4 + $0x14f8] sm:$0xff]
    %v816 = vld [vmem:[#allocation4 + $0x1500] sm:$0xff]
    %v817 = vld [vmem:[#allocation4 + $0x1508] sm:$0xff]
    %v818 = vld [vmem:[#allocation4 + $0x1510] sm:$0xff]
    %v819 = vld [vmem:[#allocation4 + $0x1518] sm:$0xff]
    %v820 = vld [vmem:[#allocation4 + $0x1520] sm:$0xff]
    %v821 = vld [vmem:[#allocation4 + $0x1528] sm:$0xff]
    %v822 = vld [vmem:[#allocation4 + $0x1530] sm:$0xff]
    %v823 = vld [vmem:[#allocation4 + $0x1538] sm:$0xff]
    %v824 = vld [vmem:[#allocation4 + $0x1540] sm:$0xff]
    %v825 = vld [vmem:[#allocation4 + $0x1548] sm:$0xff]
    %v826 = vld [vmem:[#allocation4 + $0x1550] sm:$0xff]
    %v827 = vld [vmem:[#allocation4 + $0x1558] sm:$0xff]
    %v828 = vld [vmem:[#allocation4 + $0x1560] sm:$0xff]
    %v829 = vld [vmem:[#allocation4 + $0x1568] sm:$0xff]
    %v830 = vld [vmem:[#allocation4 + $0x1570] sm:$0xff]
    %v831 = vld [vmem:[#allocation4 + $0x1578] sm:$0xff]
    %v832 = vld [vmem:[#allocation4 + $0x1580] sm:$0xff]
    %v833 = vld [vmem:[#allocation4 + $0x1588] sm:$0xff]
    %v834 = vld [vmem:[#allocation4 + $0x1590] sm:$0xff]
    %v835 = vld [vmem:[#allocation4 + $0x1598] sm:$0xff]
    %v836 = vld [vmem:[#allocation4 + $0x15a0] sm:$0xff]
    %v837 = vld [vmem:[#allocation4 + $0x15a8] sm:$0xff]
    %v838 = vld [vmem:[#allocation4 + $0x15b0] sm:$0xff]
    %v839 = vld [vmem:[#allocation4 + $0x15b8] sm:$0xff]
    %v840 = vld [vmem:[#allocation4 + $0x15c0] sm:$0xff]
    %v841 = vld [vmem:[#allocation4 + $0x15c8] sm:$0xff]
    %v842 = vld [vmem:[#allocation4 + $0x15d0] sm:$0xff]
    %v843 = vld [vmem:[#allocation4 + $0x15d8] sm:$0xff]
    %v844 = vld [vmem:[#allocation4 + $0x15e0] sm:$0xff]
    %v845 = vld [vmem:[#allocation4 + $0x15e8] sm:$0xff]
    %v846 = vld [vmem:[#allocation4 + $0x15f0] sm:$0xff]
    %v847 = vld [vmem:[#allocation4 + $0x15f8] sm:$0xff]
    %v848 = vld [vmem:[#allocation4 + $0x1600] sm:$0xff]
    %v849 = vld [vmem:[#allocation4 + $0x1608] sm:$0xff]
    %v850 = vld [vmem:[#allocation4 + $0x1610] sm:$0xff]
    %v851 = vld [vmem:[#allocation4 + $0x1618] sm:$0xff]
    %v852 = vld [vmem:[#allocation4 + $0x1620] sm:$0xff]
    %v853 = vld [vmem:[#allocation4 + $0x1628] sm:$0xff]
    %v854 = vld [vmem:[#allocation4 + $0x1630] sm:$0xff]
    %v855 = vld [vmem:[#allocation4 + $0x1638] sm:$0xff]
    %v856 = vld [vmem:[#allocation4 + $0x1640] sm:$0xff]
    %v857 = vld [vmem:[#allocation4 + $0x1648] sm:$0xff]
    %v858 = vld [vmem:[#allocation4 + $0x1650] sm:$0xff]
    %v859 = vld [vmem:[#allocation4 + $0x1658] sm:$0xff]
    %v860 = vld [vmem:[#allocation4 + $0x1660] sm:$0xff]
    %v861 = vld [vmem:[#allocation4 + $0x1668] sm:$0xff]
    %v862 = vld [vmem:[#allocation4 + $0x1670] sm:$0xff]
    %v863 = vld [vmem:[#allocation4 + $0x1678] sm:$0xff]
    %v864 = vld [vmem:[#allocation4 + $0x1680] sm:$0xff]
    %v865 = vld [vmem:[#allocation4 + $0x1688] sm:$0xff]
    %v866 = vld [vmem:[#allocation4 + $0x1690] sm:$0xff]
    %v867 = vld [vmem:[#allocation4 + $0x1698] sm:$0xff]
    %v868 = vld [vmem:[#allocation4 + $0x16a0] sm:$0xff]
    %v869 = vld [vmem:[#allocation4 + $0x16a8] sm:$0xff]
    %v870 = vld [vmem:[#allocation4 + $0x16b0] sm:$0xff]
    %v871 = vld [vmem:[#allocation4 + $0x16b8] sm:$0xff]
    %v872 = vld [vmem:[#allocation4 + $0x16c0] sm:$0xff]
    %v873 = vld [vmem:[#allocation4 + $0x16c8] sm:$0xff]
    %v874 = vld [vmem:[#allocation4 + $0x16d0] sm:$0xff]
    %v875 = vld [vmem:[#allocation4 + $0x16d8] sm:$0xff]
    %v876 = vld [vmem:[#allocation4 + $0x16e0] sm:$0xff]
    %v877 = vld [vmem:[#allocation4 + $0x16e8] sm:$0xff]
    %v878 = vld [vmem:[#allocation4 + $0x16f0] sm:$0xff]
    %v879 = vld [vmem:[#allocation4 + $0x16f8] sm:$0xff]
    %v880 = vld [vmem:[#allocation4 + $0x1700] sm:$0xff]
    %v881 = vld [vmem:[#allocation4 + $0x1708] sm:$0xff]
    %v882 = vld [vmem:[#allocation4 + $0x1710] sm:$0xff]
    %v883 = vld [vmem:[#allocation4 + $0x1718] sm:$0xff]
    %v884 = vld [vmem:[#allocation4 + $0x1720] sm:$0xff]
    %v885 = vld [vmem:[#allocation4 + $0x1728] sm:$0xff]
    %v886 = vld [vmem:[#allocation4 + $0x1730] sm:$0xff]
    %v887 = vld [vmem:[#allocation4 + $0x1738] sm:$0xff]
    %v888 = vld [vmem:[#allocation4 + $0x1740] sm:$0xff]
    %v889 = vld [vmem:[#allocation4 + $0x1748] sm:$0xff]
    %v890 = vld [vmem:[#allocation4 + $0x1750] sm:$0xff]
    %v891 = vld [vmem:[#allocation4 + $0x1758] sm:$0xff]
    %v892 = vld [vmem:[#allocation4 + $0x1760] sm:$0xff]
    %v893 = vld [vmem:[#allocation4 + $0x1768] sm:$0xff]
    %v894 = vld [vmem:[#allocation4 + $0x1770] sm:$0xff]
    %v895 = vld [vmem:[#allocation4 + $0x1778] sm:$0xff]
    %v896 = vld [vmem:[#allocation4 + $0x1780] sm:$0xff]
    %v897 = vld [vmem:[#allocation4 + $0x1788] sm:$0xff]
    %v898 = vld [vmem:[#allocation4 + $0x1790] sm:$0xff]
    %v899 = vld [vmem:[#allocation4 + $0x1798] sm:$0xff]
    %v900 = vld [vmem:[#allocation4 + $0x17a0] sm:$0xff]
    %v901 = vld [vmem:[#allocation4 + $0x17a8] sm:$0xff]
    %v902 = vld [vmem:[#allocation4 + $0x17b0] sm:$0xff]
    %v903 = vld [vmem:[#allocation4 + $0x17b8] sm:$0xff]
    %v904 = vld [vmem:[#allocation4 + $0x17c0] sm:$0xff]
    %v905 = vld [vmem:[#allocation4 + $0x17c8] sm:$0xff]
    %v906 = vld [vmem:[#allocation4 + $0x17d0] sm:$0xff]
    %v907 = vld [vmem:[#allocation4 + $0x17d8] sm:$0xff]
    %v908 = vld [vmem:[#allocation4 + $0x17e0] sm:$0xff]
    %v909 = vld [vmem:[#allocation4 + $0x17e8] sm:$0xff]
    %v910 = vld [vmem:[#allocation4 + $0x17f0] sm:$0xff]
    %v911 = vld [vmem:[#allocation4 + $0x17f8] sm:$0xff]
    %v912 = vld [vmem:[#allocation4 + $0x1800] sm:$0xff]
    %v913 = vld [vmem:[#allocation4 + $0x1808] sm:$0xff]
    %v914 = vld [vmem:[#allocation4 + $0x1810] sm:$0xff]
    %v915 = vld [vmem:[#allocation4 + $0x1818] sm:$0xff]
    %v916 = vld [vmem:[#allocation4 + $0x1820] sm:$0xff]
    %v917 = vld [vmem:[#allocation4 + $0x1828] sm:$0xff]
    %v918 = vld [vmem:[#allocation4 + $0x1830] sm:$0xff]
    %v919 = vld [vmem:[#allocation4 + $0x1838] sm:$0xff]
    %v920 = vld [vmem:[#allocation4 + $0x1840] sm:$0xff]
    %v921 = vld [vmem:[#allocation4 + $0x1848] sm:$0xff]
    %v922 = vld [vmem:[#allocation4 + $0x1850] sm:$0xff]
    %v923 = vld [vmem:[#allocation4 + $0x1858] sm:$0xff]
    %v924 = vld [vmem:[#allocation4 + $0x1860] sm:$0xff]
    %v925 = vld [vmem:[#allocation4 + $0x1868] sm:$0xff]
    %v926 = vld [vmem:[#allocation4 + $0x1870] sm:$0xff]
    %v927 = vld [vmem:[#allocation4 + $0x1878] sm:$0xff]
    %v928 = vld [vmem:[#allocation4 + $0x1880] sm:$0xff]
    %v929 = vld [vmem:[#allocation4 + $0x1888] sm:$0xff]
    %v930 = vld [vmem:[#allocation4 + $0x1890] sm:$0xff]
    %v931 = vld [vmem:[#allocation4 + $0x1898] sm:$0xff]
    %v932 = vld [vmem:[#allocation4 + $0x18a0] sm:$0xff]
    %v933 = vld [vmem:[#allocation4 + $0x18a8] sm:$0xff]
    %v934 = vld [vmem:[#allocation4 + $0x18b0] sm:$0xff]
    %v935 = vld [vmem:[#allocation4 + $0x18b8] sm:$0xff]
    %v936 = vld [vmem:[#allocation4 + $0x18c0] sm:$0xff]
    %v937 = vld [vmem:[#allocation4 + $0x18c8] sm:$0xff]
    %v938 = vld [vmem:[#allocation4 + $0x18d0] sm:$0xff]
    %v939 = vld [vmem:[#allocation4 + $0x18d8] sm:$0xff]
    %v940 = vld [vmem:[#allocation4 + $0x18e0] sm:$0xff]
    %v941 = vld [vmem:[#allocation4 + $0x18e8] sm:$0xff]
    %v942 = vld [vmem:[#allocation4 + $0x18f0] sm:$0xff]
    %v943 = vld [vmem:[#allocation4 + $0x18f8] sm:$0xff]
    %v944 = vld [vmem:[#allocation4 + $0x1900] sm:$0xff]
    %v945 = vld [vmem:[#allocation4 + $0x1908] sm:$0xff]
    %v946 = vld [vmem:[#allocation4 + $0x1910] sm:$0xff]
    %v947 = vld [vmem:[#allocation4 + $0x1918] sm:$0xff]
    %v948 = vld [vmem:[#allocation4 + $0x1920] sm:$0xff]
    %v949 = vld [vmem:[#allocation4 + $0x1928] sm:$0xff]
    %v950 = vld [vmem:[#allocation4 + $0x1930] sm:$0xff]
    %v951 = vld [vmem:[#allocation4 + $0x1938] sm:$0xff]
    %v952 = vld [vmem:[#allocation4 + $0x1940] sm:$0xff]
    %v953 = vld [vmem:[#allocation4 + $0x1948] sm:$0xff]
    %v954 = vld [vmem:[#allocation4 + $0x1950] sm:$0xff]
    %v955 = vld [vmem:[#allocation4 + $0x1958] sm:$0xff]
    %v956 = vld [vmem:[#allocation4 + $0x1960] sm:$0xff]
    %v957 = vld [vmem:[#allocation4 + $0x1968] sm:$0xff]
    %v958 = vld [vmem:[#allocation4 + $0x1970] sm:$0xff]
    %v959 = vld [vmem:[#allocation4 + $0x1978] sm:$0xff]
    %v960 = vld [vmem:[#allocation4 + $0x1980] sm:$0xff]
    %v961 = vld [vmem:[#allocation4 + $0x1988] sm:$0xff]
    %v962 = vld [vmem:[#allocation4 + $0x1990] sm:$0xff]
    %v963 = vld [vmem:[#allocation4 + $0x1998] sm:$0xff]
    %v964 = vld [vmem:[#allocation4 + $0x19a0] sm:$0xff]
    %v965 = vld [vmem:[#allocation4 + $0x19a8] sm:$0xff]
    %v966 = vld [vmem:[#allocation4 + $0x19b0] sm:$0xff]
    %v967 = vld [vmem:[#allocation4 + $0x19b8] sm:$0xff]
    %v968 = vld [vmem:[#allocation4 + $0x19c0] sm:$0xff]
    %v969 = vld [vmem:[#allocation4 + $0x19c8] sm:$0xff]
    %v970 = vld [vmem:[#allocation4 + $0x19d0] sm:$0xff]
    %v971 = vld [vmem:[#allocation4 + $0x19d8] sm:$0xff]
    %v972 = vld [vmem:[#allocation4 + $0x19e0] sm:$0xff]
    %v973 = vld [vmem:[#allocation4 + $0x19e8] sm:$0xff]
    %v974 = vld [vmem:[#allocation4 + $0x19f0] sm:$0xff]
    %v975 = vld [vmem:[#allocation4 + $0x19f8] sm:$0xff]
    %v976 = vld [vmem:[#allocation4 + $0x1a00] sm:$0xff]
    %v977 = vld [vmem:[#allocation4 + $0x1a08] sm:$0xff]
    %v978 = vld [vmem:[#allocation4 + $0x1a10] sm:$0xff]
    %v979 = vld [vmem:[#allocation4 + $0x1a18] sm:$0xff]
    %v980 = vld [vmem:[#allocation4 + $0x1a20] sm:$0xff]
    %v981 = vld [vmem:[#allocation4 + $0x1a28] sm:$0xff]
    %v982 = vld [vmem:[#allocation4 + $0x1a30] sm:$0xff]
    %v983 = vld [vmem:[#allocation4 + $0x1a38] sm:$0xff]
    %v984 = vld [vmem:[#allocation4 + $0x1a40] sm:$0xff]
    %v985 = vld [vmem:[#allocation4 + $0x1a48] sm:$0xff]
    %v986 = vld [vmem:[#allocation4 + $0x1a50] sm:$0xff]
    %v987 = vld [vmem:[#allocation4 + $0x1a58] sm:$0xff]
    %v988 = vld [vmem:[#allocation4 + $0x1a60] sm:$0xff]
    %v989 = vld [vmem:[#allocation4 + $0x1a68] sm:$0xff]
    %v990 = vld [vmem:[#allocation4 + $0x1a70] sm:$0xff]
    %v991 = vld [vmem:[#allocation4 + $0x1a78] sm:$0xff]
    %v992 = vld [vmem:[#allocation4 + $0x1a80] sm:$0xff]
    %v993 = vld [vmem:[#allocation4 + $0x1a88] sm:$0xff]
    %v994 = vld [vmem:[#allocation4 + $0x1a90] sm:$0xff]
    %v995 = vld [vmem:[#allocation4 + $0x1a98] sm:$0xff]
    %v996 = vld [vmem:[#allocation4 + $0x1aa0] sm:$0xff]
    %v997 = vld [vmem:[#allocation4 + $0x1aa8] sm:$0xff]
    %v998 = vld [vmem:[#allocation4 + $0x1ab0] sm:$0xff]
    %v999 = vld [vmem:[#allocation4 + $0x1ab8] sm:$0xff]
    %v1000 = vld [vmem:[#allocation4 + $0x1ac0] sm:$0xff]
    %v1001 = vld [vmem:[#allocation4 + $0x1ac8] sm:$0xff]
    %v1002 = vld [vmem:[#allocation4 + $0x1ad0] sm:$0xff]
    %v1003 = vld [vmem:[#allocation4 + $0x1ad8] sm:$0xff]
    %v1004 = vld [vmem:[#allocation4 + $0x1ae0] sm:$0xff]
    %v1005 = vld [vmem:[#allocation4 + $0x1ae8] sm:$0xff]
    %v1006 = vld [vmem:[#allocation4 + $0x1af0] sm:$0xff]
    %v1007 = vld [vmem:[#allocation4 + $0x1af8] sm:$0xff]
    %v1008 = vld [vmem:[#allocation4 + $0x1b00] sm:$0xff]
    %v1009 = vld [vmem:[#allocation4 + $0x1b08] sm:$0xff]
    %v1010 = vld [vmem:[#allocation4 + $0x1b10] sm:$0xff]
    %v1011 = vld [vmem:[#allocation4 + $0x1b18] sm:$0xff]
    %v1012 = vld [vmem:[#allocation4 + $0x1b20] sm:$0xff]
    %v1013 = vld [vmem:[#allocation4 + $0x1b28] sm:$0xff]
    %v1014 = vld [vmem:[#allocation4 + $0x1b30] sm:$0xff]
    %v1015 = vld [vmem:[#allocation4 + $0x1b38] sm:$0xff]
    %v1016 = vld [vmem:[#allocation4 + $0x1b40] sm:$0xff]
    %v1017 = vld [vmem:[#allocation4 + $0x1b48] sm:$0xff]
    %v1018 = vld [vmem:[#allocation4 + $0x1b50] sm:$0xff]
    %v1019 = vld [vmem:[#allocation4 + $0x1b58] sm:$0xff]
    %v1020 = vld [vmem:[#allocation4 + $0x1b60] sm:$0xff]
    %v1021 = vld [vmem:[#allocation4 + $0x1b68] sm:$0xff]
    %v1022 = vld [vmem:[#allocation4 + $0x1b70] sm:$0xff]
    %v1023 = vld [vmem:[#allocation4 + $0x1b78] sm:$0xff]
    %v1024 = vld [vmem:[#allocation4 + $0x1b80] sm:$0xff]
    %v1025 = vld [vmem:[#allocation4 + $0x1b88] sm:$0xff]
    %v1026 = vld [vmem:[#allocation4 + $0x1b90] sm:$0xff]
    %v1027 = vld [vmem:[#allocation4 + $0x1b98] sm:$0xff]
    %v1028 = vld [vmem:[#allocation4 + $0x1ba0] sm:$0xff]
    %v1029 = vld [vmem:[#allocation4 + $0x1ba8] sm:$0xff]
    %v1030 = vld [vmem:[#allocation4 + $0x1bb0] sm:$0xff]
    %v1031 = vld [vmem:[#allocation4 + $0x1bb8] sm:$0xff]
    %v1032 = vld [vmem:[#allocation4 + $0x1bc0] sm:$0xff]
    %v1033 = vld [vmem:[#allocation4 + $0x1bc8] sm:$0xff]
    %v1034 = vld [vmem:[#allocation4 + $0x1bd0] sm:$0xff]
    %v1035 = vld [vmem:[#allocation4 + $0x1bd8] sm:$0xff]
    %v1036 = vld [vmem:[#allocation4 + $0x1be0] sm:$0xff]
    %v1037 = vld [vmem:[#allocation4 + $0x1be8] sm:$0xff]
    %v1038 = vld [vmem:[#allocation4 + $0x1bf0] sm:$0xff]
    %v1039 = vld [vmem:[#allocation4 + $0x1bf8] sm:$0xff]
    %v1040 = vld [vmem:[#allocation4 + $0x1c00] sm:$0xff]
    %v1041 = vld [vmem:[#allocation4 + $0x1c08] sm:$0xff]
    %v1042 = vld [vmem:[#allocation4 + $0x1c10] sm:$0xff]
    %v1043 = vld [vmem:[#allocation4 + $0x1c18] sm:$0xff]
    %v1044 = vld [vmem:[#allocation4 + $0x1c20] sm:$0xff]
    %v1045 = vld [vmem:[#allocation4 + $0x1c28] sm:$0xff]
    %v1046 = vld [vmem:[#allocation4 + $0x1c30] sm:$0xff]
    %v1047 = vld [vmem:[#allocation4 + $0x1c38] sm:$0xff]
    %v1048 = vld [vmem:[#allocation4 + $0x1c40] sm:$0xff]
    %v1049 = vld [vmem:[#allocation4 + $0x1c48] sm:$0xff]
    %v1050 = vld [vmem:[#allocation4 + $0x1c50] sm:$0xff]
    %v1051 = vld [vmem:[#allocation4 + $0x1c58] sm:$0xff]
    %v1052 = vld [vmem:[#allocation4 + $0x1c60] sm:$0xff]
    %v1053 = vld [vmem:[#allocation4 + $0x1c68] sm:$0xff]
    %v1054 = vld [vmem:[#allocation4 + $0x1c70] sm:$0xff]
    %v1055 = vld [vmem:[#allocation4 + $0x1c78] sm:$0xff]
    %v1056 = vld [vmem:[#allocation4 + $0x1c80] sm:$0xff]
    %v1057 = vld [vmem:[#allocation4 + $0x1c88] sm:$0xff]
    %v1058 = vld [vmem:[#allocation4 + $0x1c90] sm:$0xff]
    %v1059 = vld [vmem:[#allocation4 + $0x1c98] sm:$0xff]
    %v1060 = vld [vmem:[#allocation4 + $0x1ca0] sm:$0xff]
    %v1061 = vld [vmem:[#allocation4 + $0x1ca8] sm:$0xff]
    %v1062 = vld [vmem:[#allocation4 + $0x1cb0] sm:$0xff]
    %v1063 = vld [vmem:[#allocation4 + $0x1cb8] sm:$0xff]
    %v1064 = vld [vmem:[#allocation4 + $0x1cc0] sm:$0xff]
    %v1065 = vld [vmem:[#allocation4 + $0x1cc8] sm:$0xff]
    %v1066 = vld [vmem:[#allocation4 + $0x1cd0] sm:$0xff]
    %v1067 = vld [vmem:[#allocation4 + $0x1cd8] sm:$0xff]
    %v1068 = vld [vmem:[#allocation4 + $0x1ce0] sm:$0xff]
    %v1069 = vld [vmem:[#allocation4 + $0x1ce8] sm:$0xff]
    %v1070 = vld [vmem:[#allocation4 + $0x1cf0] sm:$0xff]
    %v1071 = vld [vmem:[#allocation4 + $0x1cf8] sm:$0xff]
    %v1072 = vld [vmem:[#allocation4 + $0x1d00] sm:$0xff]
    %v1073 = vld [vmem:[#allocation4 + $0x1d08] sm:$0xff]
    %v1074 = vld [vmem:[#allocation4 + $0x1d10] sm:$0xff]
    %v1075 = vld [vmem:[#allocation4 + $0x1d18] sm:$0xff]
    %v1076 = vld [vmem:[#allocation4 + $0x1d20] sm:$0xff]
    %v1077 = vld [vmem:[#allocation4 + $0x1d28] sm:$0xff]
    %v1078 = vld [vmem:[#allocation4 + $0x1d30] sm:$0xff]
    %v1079 = vld [vmem:[#allocation4 + $0x1d38] sm:$0xff]
    %v1080 = vld [vmem:[#allocation4 + $0x1d40] sm:$0xff]
    %v1081 = vld [vmem:[#allocation4 + $0x1d48] sm:$0xff]
    %v1082 = vld [vmem:[#allocation4 + $0x1d50] sm:$0xff]
    %v1083 = vld [vmem:[#allocation4 + $0x1d58] sm:$0xff]
    %v1084 = vld [vmem:[#allocation4 + $0x1d60] sm:$0xff]
    %v1085 = vld [vmem:[#allocation4 + $0x1d68] sm:$0xff]
    %v1086 = vld [vmem:[#allocation4 + $0x1d70] sm:$0xff]
    %v1087 = vld [vmem:[#allocation4 + $0x1d78] sm:$0xff]
    %v1088 = vld [vmem:[#allocation4 + $0x1d80] sm:$0xff]
    %v1089 = vld [vmem:[#allocation4 + $0x1d88] sm:$0xff]
    %v1090 = vld [vmem:[#allocation4 + $0x1d90] sm:$0xff]
    %v1091 = vld [vmem:[#allocation4 + $0x1d98] sm:$0xff]
    %v1092 = vld [vmem:[#allocation4 + $0x1da0] sm:$0xff]
    %v1093 = vld [vmem:[#allocation4 + $0x1da8] sm:$0xff]
    %v1094 = vld [vmem:[#allocation4 + $0x1db0] sm:$0xff]
    %v1095 = vld [vmem:[#allocation4 + $0x1db8] sm:$0xff]
    %v1096 = vld [vmem:[#allocation4 + $0x1dc0] sm:$0xff]
    %v1097 = vld [vmem:[#allocation4 + $0x1dc8] sm:$0xff]
    %v1098 = vld [vmem:[#allocation4 + $0x1dd0] sm:$0xff]
    %v1099 = vld [vmem:[#allocation4 + $0x1dd8] sm:$0xff]
    %v1100 = vld [vmem:[#allocation4 + $0x1de0] sm:$0xff]
    %v1101 = vld [vmem:[#allocation4 + $0x1de8] sm:$0xff]
    %v1102 = vld [vmem:[#allocation4 + $0x1df0] sm:$0xff]
    %v1103 = vld [vmem:[#allocation4 + $0x1df8] sm:$0xff]
    %v1104 = vld [vmem:[#allocation4 + $0x1e00] sm:$0xff]
    %v1105 = vld [vmem:[#allocation4 + $0x1e08] sm:$0xff]
    %v1106 = vld [vmem:[#allocation4 + $0x1e10] sm:$0xff]
    %v1107 = vld [vmem:[#allocation4 + $0x1e18] sm:$0xff]
    %v1108 = vld [vmem:[#allocation4 + $0x1e20] sm:$0xff]
    %v1109 = vld [vmem:[#allocation4 + $0x1e28] sm:$0xff]
    %v1110 = vld [vmem:[#allocation4 + $0x1e30] sm:$0xff]
    %v1111 = vld [vmem:[#allocation4 + $0x1e38] sm:$0xff]
    %v1112 = vld [vmem:[#allocation4 + $0x1e40] sm:$0xff]
    %v1113 = vld [vmem:[#allocation4 + $0x1e48] sm:$0xff]
    %v1114 = vld [vmem:[#allocation4 + $0x1e50] sm:$0xff]
    %v1115 = vld [vmem:[#allocation4 + $0x1e58] sm:$0xff]
    %v1116 = vld [vmem:[#allocation4 + $0x1e60] sm:$0xff]
    %v1117 = vld [vmem:[#allocation4 + $0x1e68] sm:$0xff]
    %v1118 = vld [vmem:[#allocation4 + $0x1e70] sm:$0xff]
    %v1119 = vld [vmem:[#allocation4 + $0x1e78] sm:$0xff]
    %v1120 = vld [vmem:[#allocation4 + $0x1e80] sm:$0xff]
    %v1121 = vld [vmem:[#allocation4 + $0x1e88] sm:$0xff]
    %v1122 = vld [vmem:[#allocation4 + $0x1e90] sm:$0xff]
    %v1123 = vld [vmem:[#allocation4 + $0x1e98] sm:$0xff]
    %v1124 = vld [vmem:[#allocation4 + $0x1ea0] sm:$0xff]
    %v1125 = vld [vmem:[#allocation4 + $0x1ea8] sm:$0xff]
    %v1126 = vld [vmem:[#allocation4 + $0x1eb0] sm:$0xff]
    %v1127 = vld [vmem:[#allocation4 + $0x1eb8] sm:$0xff]
    %v1128 = vld [vmem:[#allocation4 + $0x1ec0] sm:$0xff]
    %v1129 = vld [vmem:[#allocation4 + $0x1ec8] sm:$0xff]
    %v1130 = vld [vmem:[#allocation4 + $0x1ed0] sm:$0xff]
    %v1131 = vld [vmem:[#allocation4 + $0x1ed8] sm:$0xff]
    %v1132 = vld [vmem:[#allocation4 + $0x1ee0] sm:$0xff]
    %v1133 = vld [vmem:[#allocation4 + $0x1ee8] sm:$0xff]
    %v1134 = vld [vmem:[#allocation4 + $0x1ef0] sm:$0xff]
    %v1135 = vld [vmem:[#allocation4 + $0x1ef8] sm:$0xff]
    %v1136 = vld [vmem:[#allocation4 + $0x1f00] sm:$0xff]
    %v1137 = vld [vmem:[#allocation4 + $0x1f08] sm:$0xff]
    %v1138 = vld [vmem:[#allocation4 + $0x1f10] sm:$0xff]
    %v1139 = vld [vmem:[#allocation4 + $0x1f18] sm:$0xff]
    %v1140 = vld [vmem:[#allocation4 + $0x1f20] sm:$0xff]
    %v1141 = vld [vmem:[#allocation4 + $0x1f28] sm:$0xff]
    %v1142 = vld [vmem:[#allocation4 + $0x1f30] sm:$0xff]
    %v1143 = vld [vmem:[#allocation4 + $0x1f38] sm:$0xff]
    %v1144 = vld [vmem:[#allocation4 + $0x1f40] sm:$0xff]
    %v1145 = vld [vmem:[#allocation4 + $0x1f48] sm:$0xff]
    %v1146 = vld [vmem:[#allocation4 + $0x1f50] sm:$0xff]
    %v1147 = vld [vmem:[#allocation4 + $0x1f58] sm:$0xff]
    %v1148 = vld [vmem:[#allocation4 + $0x1f60] sm:$0xff]
    %v1149 = vld [vmem:[#allocation4 + $0x1f68] sm:$0xff]
    %v1150 = vld [vmem:[#allocation4 + $0x1f70] sm:$0xff]
    %v1151 = vld [vmem:[#allocation4 + $0x1f78] sm:$0xff]
    %v1152 = vld [vmem:[#allocation4 + $0x1f80] sm:$0xff]
    %v1153 = vld [vmem:[#allocation4 + $0x1f88] sm:$0xff]
    %v1154 = vld [vmem:[#allocation4 + $0x1f90] sm:$0xff]
    %v1155 = vld [vmem:[#allocation4 + $0x1f98] sm:$0xff]
    %v1156 = vld [vmem:[#allocation4 + $0x1fa0] sm:$0xff]
    %v1157 = vld [vmem:[#allocation4 + $0x1fa8] sm:$0xff]
    %v1158 = vld [vmem:[#allocation4 + $0x1fb0] sm:$0xff]
    %v1159 = vld [vmem:[#allocation4 + $0x1fb8] sm:$0xff]
    %v1160 = vld [vmem:[#allocation4 + $0x1fc0] sm:$0xff]
    %v1161 = vld [vmem:[#allocation4 + $0x1fc8] sm:$0xff]
    %v1162 = vld [vmem:[#allocation4 + $0x1fd0] sm:$0xff]
    %v1163 = vld [vmem:[#allocation4 + $0x1fd8] sm:$0xff]
    %v1164 = vld [vmem:[#allocation4 + $0x1fe0] sm:$0xff]
    %v1165 = vld [vmem:[#allocation4 + $0x1fe8] sm:$0xff]
    %v1166 = vld [vmem:[#allocation4 + $0x1ff0] sm:$0xff]
    %v1167 = vld [vmem:[#allocation4 + $0x1ff8] sm:$0xff]
    %v1168 = vpack.c.bf16 %v146, %v144
    %v1169 = vpack.c.bf16 %v147, %v145
    %v1170 = vpack.c.bf16 %v150, %v148
    %v1171 = vpack.c.bf16 %v151, %v149
    %v1172 = vpack.c.bf16 %v154, %v152
    %v1173 = vpack.c.bf16 %v155, %v153
    %v1174 = vpack.c.bf16 %v158, %v156
    %v1175 = vpack.c.bf16 %v159, %v157
    %v1176 = vpack.c.bf16 %v162, %v160
    %v1177 = vpack.c.bf16 %v163, %v161
    %v1178 = vpack.c.bf16 %v166, %v164
    %v1179 = vpack.c.bf16 %v167, %v165
    %v1180 = vpack.c.bf16 %v170, %v168
    %v1181 = vpack.c.bf16 %v171, %v169
    %v1182 = vpack.c.bf16 %v174, %v172
    %v1183 = vpack.c.bf16 %v175, %v173
    %v1184 = vpack.c.bf16 %v178, %v176
    %v1185 = vpack.c.bf16 %v179, %v177
    %v1186 = vpack.c.bf16 %v182, %v180
    %v1187 = vpack.c.bf16 %v183, %v181
    %v1188 = vpack.c.bf16 %v186, %v184
    %v1189 = vpack.c.bf16 %v187, %v185
    %v1190 = vpack.c.bf16 %v190, %v188
    %v1191 = vpack.c.bf16 %v191, %v189
    %v1192 = vpack.c.bf16 %v194, %v192
    %v1193 = vpack.c.bf16 %v195, %v193
    %v1194 = vpack.c.bf16 %v198, %v196
    %v1195 = vpack.c.bf16 %v199, %v197
    %v1196 = vpack.c.bf16 %v202, %v200
    %v1197 = vpack.c.bf16 %v203, %v201
    %v1198 = vpack.c.bf16 %v206, %v204
    %v1199 = vpack.c.bf16 %v207, %v205
    %v1200 = vpack.c.bf16 %v210, %v208
    %v1201 = vpack.c.bf16 %v211, %v209
    %v1202 = vpack.c.bf16 %v214, %v212
    %v1203 = vpack.c.bf16 %v215, %v213
    %v1204 = vpack.c.bf16 %v218, %v216
    %v1205 = vpack.c.bf16 %v219, %v217
    %v1206 = vpack.c.bf16 %v222, %v220
    %v1207 = vpack.c.bf16 %v223, %v221
    %v1208 = vpack.c.bf16 %v226, %v224
    %v1209 = vpack.c.bf16 %v227, %v225
    %v1210 = vpack.c.bf16 %v230, %v228
    %v1211 = vpack.c.bf16 %v231, %v229
    %v1212 = vpack.c.bf16 %v234, %v232
    %v1213 = vpack.c.bf16 %v235, %v233
    %v1214 = vpack.c.bf16 %v238, %v236
    %v1215 = vpack.c.bf16 %v239, %v237
    %v1216 = vpack.c.bf16 %v242, %v240
    %v1217 = vpack.c.bf16 %v243, %v241
    %v1218 = vpack.c.bf16 %v246, %v244
    %v1219 = vpack.c.bf16 %v247, %v245
    %v1220 = vpack.c.bf16 %v250, %v248
    %v1221 = vpack.c.bf16 %v251, %v249
    %v1222 = vpack.c.bf16 %v254, %v252
    %v1223 = vpack.c.bf16 %v255, %v253
    %v1224 = vpack.c.bf16 %v258, %v256
    %v1225 = vpack.c.bf16 %v259, %v257
    %v1226 = vpack.c.bf16 %v262, %v260
    %v1227 = vpack.c.bf16 %v263, %v261
    %v1228 = vpack.c.bf16 %v266, %v264
    %v1229 = vpack.c.bf16 %v267, %v265
    %v1230 = vpack.c.bf16 %v270, %v268
    %v1231 = vpack.c.bf16 %v271, %v269
    %v1232 = vpack.c.bf16 %v274, %v272
    %v1233 = vpack.c.bf16 %v275, %v273
    %v1234 = vpack.c.bf16 %v278, %v276
    %v1235 = vpack.c.bf16 %v279, %v277
    %v1236 = vpack.c.bf16 %v282, %v280
    %v1237 = vpack.c.bf16 %v283, %v281
    %v1238 = vpack.c.bf16 %v286, %v284
    %v1239 = vpack.c.bf16 %v287, %v285
    %v1240 = vpack.c.bf16 %v290, %v288
    %v1241 = vpack.c.bf16 %v291, %v289
    %v1242 = vpack.c.bf16 %v294, %v292
    %v1243 = vpack.c.bf16 %v295, %v293
    %v1244 = vpack.c.bf16 %v298, %v296
    %v1245 = vpack.c.bf16 %v299, %v297
    %v1246 = vpack.c.bf16 %v302, %v300
    %v1247 = vpack.c.bf16 %v303, %v301
    %v1248 = vpack.c.bf16 %v306, %v304
    %v1249 = vpack.c.bf16 %v307, %v305
    %v1250 = vpack.c.bf16 %v310, %v308
    %v1251 = vpack.c.bf16 %v311, %v309
    %v1252 = vpack.c.bf16 %v314, %v312
    %v1253 = vpack.c.bf16 %v315, %v313
    %v1254 = vpack.c.bf16 %v318, %v316
    %v1255 = vpack.c.bf16 %v319, %v317
    %v1256 = vpack.c.bf16 %v322, %v320
    %v1257 = vpack.c.bf16 %v323, %v321
    %v1258 = vpack.c.bf16 %v326, %v324
    %v1259 = vpack.c.bf16 %v327, %v325
    %v1260 = vpack.c.bf16 %v330, %v328
    %v1261 = vpack.c.bf16 %v331, %v329
    %v1262 = vpack.c.bf16 %v334, %v332
    %v1263 = vpack.c.bf16 %v335, %v333
    %v1264 = vpack.c.bf16 %v338, %v336
    %v1265 = vpack.c.bf16 %v339, %v337
    %v1266 = vpack.c.bf16 %v342, %v340
    %v1267 = vpack.c.bf16 %v343, %v341
    %v1268 = vpack.c.bf16 %v346, %v344
    %v1269 = vpack.c.bf16 %v347, %v345
    %v1270 = vpack.c.bf16 %v350, %v348
    %v1271 = vpack.c.bf16 %v351, %v349
    %v1272 = vpack.c.bf16 %v354, %v352
    %v1273 = vpack.c.bf16 %v355, %v353
    %v1274 = vpack.c.bf16 %v358, %v356
    %v1275 = vpack.c.bf16 %v359, %v357
    %v1276 = vpack.c.bf16 %v362, %v360
    %v1277 = vpack.c.bf16 %v363, %v361
    %v1278 = vpack.c.bf16 %v366, %v364
    %v1279 = vpack.c.bf16 %v367, %v365
    %v1280 = vpack.c.bf16 %v370, %v368
    %v1281 = vpack.c.bf16 %v371, %v369
    %v1282 = vpack.c.bf16 %v374, %v372
    %v1283 = vpack.c.bf16 %v375, %v373
    %v1284 = vpack.c.bf16 %v378, %v376
    %v1285 = vpack.c.bf16 %v379, %v377
    %v1286 = vpack.c.bf16 %v382, %v380
    %v1287 = vpack.c.bf16 %v383, %v381
    %v1288 = vpack.c.bf16 %v386, %v384
    %v1289 = vpack.c.bf16 %v387, %v385
    %v1290 = vpack.c.bf16 %v390, %v388
    %v1291 = vpack.c.bf16 %v391, %v389
    %v1292 = vpack.c.bf16 %v394, %v392
    %v1293 = vpack.c.bf16 %v395, %v393
    %v1294 = vpack.c.bf16 %v398, %v396
    %v1295 = vpack.c.bf16 %v399, %v397
    %v1296 = vpack.c.bf16 %v402, %v400
    %v1297 = vpack.c.bf16 %v403, %v401
    %v1298 = vpack.c.bf16 %v406, %v404
    %v1299 = vpack.c.bf16 %v407, %v405
    %v1300 = vpack.c.bf16 %v410, %v408
    %v1301 = vpack.c.bf16 %v411, %v409
    %v1302 = vpack.c.bf16 %v414, %v412
    %v1303 = vpack.c.bf16 %v415, %v413
    %v1304 = vpack.c.bf16 %v418, %v416
    %v1305 = vpack.c.bf16 %v419, %v417
    %v1306 = vpack.c.bf16 %v422, %v420
    %v1307 = vpack.c.bf16 %v423, %v421
    %v1308 = vpack.c.bf16 %v426, %v424
    %v1309 = vpack.c.bf16 %v427, %v425
    %v1310 = vpack.c.bf16 %v430, %v428
    %v1311 = vpack.c.bf16 %v431, %v429
    %v1312 = vpack.c.bf16 %v434, %v432
    %v1313 = vpack.c.bf16 %v435, %v433
    %v1314 = vpack.c.bf16 %v438, %v436
    %v1315 = vpack.c.bf16 %v439, %v437
    %v1316 = vpack.c.bf16 %v442, %v440
    %v1317 = vpack.c.bf16 %v443, %v441
    %v1318 = vpack.c.bf16 %v446, %v444
    %v1319 = vpack.c.bf16 %v447, %v445
    %v1320 = vpack.c.bf16 %v450, %v448
    %v1321 = vpack.c.bf16 %v451, %v449
    %v1322 = vpack.c.bf16 %v454, %v452
    %v1323 = vpack.c.bf16 %v455, %v453
    %v1324 = vpack.c.bf16 %v458, %v456
    %v1325 = vpack.c.bf16 %v459, %v457
    %v1326 = vpack.c.bf16 %v462, %v460
    %v1327 = vpack.c.bf16 %v463, %v461
    %v1328 = vpack.c.bf16 %v466, %v464
    %v1329 = vpack.c.bf16 %v467, %v465
    %v1330 = vpack.c.bf16 %v470, %v468
    %v1331 = vpack.c.bf16 %v471, %v469
    %v1332 = vpack.c.bf16 %v474, %v472
    %v1333 = vpack.c.bf16 %v475, %v473
    %v1334 = vpack.c.bf16 %v478, %v476
    %v1335 = vpack.c.bf16 %v479, %v477
    %v1336 = vpack.c.bf16 %v482, %v480
    %v1337 = vpack.c.bf16 %v483, %v481
    %v1338 = vpack.c.bf16 %v486, %v484
    %v1339 = vpack.c.bf16 %v487, %v485
    %v1340 = vpack.c.bf16 %v490, %v488
    %v1341 = vpack.c.bf16 %v491, %v489
    %v1342 = vpack.c.bf16 %v494, %v492
    %v1343 = vpack.c.bf16 %v495, %v493
    %v1344 = vpack.c.bf16 %v498, %v496
    %v1345 = vpack.c.bf16 %v499, %v497
    %v1346 = vpack.c.bf16 %v502, %v500
    %v1347 = vpack.c.bf16 %v503, %v501
    %v1348 = vpack.c.bf16 %v506, %v504
    %v1349 = vpack.c.bf16 %v507, %v505
    %v1350 = vpack.c.bf16 %v510, %v508
    %v1351 = vpack.c.bf16 %v511, %v509
    %v1352 = vpack.c.bf16 %v514, %v512
    %v1353 = vpack.c.bf16 %v515, %v513
    %v1354 = vpack.c.bf16 %v518, %v516
    %v1355 = vpack.c.bf16 %v519, %v517
    %v1356 = vpack.c.bf16 %v522, %v520
    %v1357 = vpack.c.bf16 %v523, %v521
    %v1358 = vpack.c.bf16 %v526, %v524
    %v1359 = vpack.c.bf16 %v527, %v525
    %v1360 = vpack.c.bf16 %v530, %v528
    %v1361 = vpack.c.bf16 %v531, %v529
    %v1362 = vpack.c.bf16 %v534, %v532
    %v1363 = vpack.c.bf16 %v535, %v533
    %v1364 = vpack.c.bf16 %v538, %v536
    %v1365 = vpack.c.bf16 %v539, %v537
    %v1366 = vpack.c.bf16 %v542, %v540
    %v1367 = vpack.c.bf16 %v543, %v541
    %v1368 = vpack.c.bf16 %v546, %v544
    %v1369 = vpack.c.bf16 %v547, %v545
    %v1370 = vpack.c.bf16 %v550, %v548
    %v1371 = vpack.c.bf16 %v551, %v549
    %v1372 = vpack.c.bf16 %v554, %v552
    %v1373 = vpack.c.bf16 %v555, %v553
    %v1374 = vpack.c.bf16 %v558, %v556
    %v1375 = vpack.c.bf16 %v559, %v557
    %v1376 = vpack.c.bf16 %v562, %v560
    %v1377 = vpack.c.bf16 %v563, %v561
    %v1378 = vpack.c.bf16 %v566, %v564
    %v1379 = vpack.c.bf16 %v567, %v565
    %v1380 = vpack.c.bf16 %v570, %v568
    %v1381 = vpack.c.bf16 %v571, %v569
    %v1382 = vpack.c.bf16 %v574, %v572
    %v1383 = vpack.c.bf16 %v575, %v573
    %v1384 = vpack.c.bf16 %v578, %v576
    %v1385 = vpack.c.bf16 %v579, %v577
    %v1386 = vpack.c.bf16 %v582, %v580
    %v1387 = vpack.c.bf16 %v583, %v581
    %v1388 = vpack.c.bf16 %v586, %v584
    %v1389 = vpack.c.bf16 %v587, %v585
    %v1390 = vpack.c.bf16 %v590, %v588
    %v1391 = vpack.c.bf16 %v591, %v589
    %v1392 = vpack.c.bf16 %v594, %v592
    %v1393 = vpack.c.bf16 %v595, %v593
    %v1394 = vpack.c.bf16 %v598, %v596
    %v1395 = vpack.c.bf16 %v599, %v597
    %v1396 = vpack.c.bf16 %v602, %v600
    %v1397 = vpack.c.bf16 %v603, %v601
    %v1398 = vpack.c.bf16 %v606, %v604
    %v1399 = vpack.c.bf16 %v607, %v605
    %v1400 = vpack.c.bf16 %v610, %v608
    %v1401 = vpack.c.bf16 %v611, %v609
    %v1402 = vpack.c.bf16 %v614, %v612
    %v1403 = vpack.c.bf16 %v615, %v613
    %v1404 = vpack.c.bf16 %v618, %v616
    %v1405 = vpack.c.bf16 %v619, %v617
    %v1406 = vpack.c.bf16 %v622, %v620
    %v1407 = vpack.c.bf16 %v623, %v621
    %v1408 = vpack.c.bf16 %v626, %v624
    %v1409 = vpack.c.bf16 %v627, %v625
    %v1410 = vpack.c.bf16 %v630, %v628
    %v1411 = vpack.c.bf16 %v631, %v629
    %v1412 = vpack.c.bf16 %v634, %v632
    %v1413 = vpack.c.bf16 %v635, %v633
    %v1414 = vpack.c.bf16 %v638, %v636
    %v1415 = vpack.c.bf16 %v639, %v637
    %v1416 = vpack.c.bf16 %v642, %v640
    %v1417 = vpack.c.bf16 %v643, %v641
    %v1418 = vpack.c.bf16 %v646, %v644
    %v1419 = vpack.c.bf16 %v647, %v645
    %v1420 = vpack.c.bf16 %v650, %v648
    %v1421 = vpack.c.bf16 %v651, %v649
    %v1422 = vpack.c.bf16 %v654, %v652
    %v1423 = vpack.c.bf16 %v655, %v653
    %v1424 = vpack.c.bf16 %v658, %v656
    %v1425 = vpack.c.bf16 %v659, %v657
    %v1426 = vpack.c.bf16 %v662, %v660
    %v1427 = vpack.c.bf16 %v663, %v661
    %v1428 = vpack.c.bf16 %v666, %v664
    %v1429 = vpack.c.bf16 %v667, %v665
    %v1430 = vpack.c.bf16 %v670, %v668
    %v1431 = vpack.c.bf16 %v671, %v669
    %v1432 = vpack.c.bf16 %v674, %v672
    %v1433 = vpack.c.bf16 %v675, %v673
    %v1434 = vpack.c.bf16 %v678, %v676
    %v1435 = vpack.c.bf16 %v679, %v677
    %v1436 = vpack.c.bf16 %v682, %v680
    %v1437 = vpack.c.bf16 %v683, %v681
    %v1438 = vpack.c.bf16 %v686, %v684
    %v1439 = vpack.c.bf16 %v687, %v685
    %v1440 = vpack.c.bf16 %v690, %v688
    %v1441 = vpack.c.bf16 %v691, %v689
    %v1442 = vpack.c.bf16 %v694, %v692
    %v1443 = vpack.c.bf16 %v695, %v693
    %v1444 = vpack.c.bf16 %v698, %v696
    %v1445 = vpack.c.bf16 %v699, %v697
    %v1446 = vpack.c.bf16 %v702, %v700
    %v1447 = vpack.c.bf16 %v703, %v701
    %v1448 = vpack.c.bf16 %v706, %v704
    %v1449 = vpack.c.bf16 %v707, %v705
    %v1450 = vpack.c.bf16 %v710, %v708
    %v1451 = vpack.c.bf16 %v711, %v709
    %v1452 = vpack.c.bf16 %v714, %v712
    %v1453 = vpack.c.bf16 %v715, %v713
    %v1454 = vpack.c.bf16 %v718, %v716
    %v1455 = vpack.c.bf16 %v719, %v717
    %v1456 = vpack.c.bf16 %v722, %v720
    %v1457 = vpack.c.bf16 %v723, %v721
    %v1458 = vpack.c.bf16 %v726, %v724
    %v1459 = vpack.c.bf16 %v727, %v725
    %v1460 = vpack.c.bf16 %v730, %v728
    %v1461 = vpack.c.bf16 %v731, %v729
    %v1462 = vpack.c.bf16 %v734, %v732
    %v1463 = vpack.c.bf16 %v735, %v733
    %v1464 = vpack.c.bf16 %v738, %v736
    %v1465 = vpack.c.bf16 %v739, %v737
    %v1466 = vpack.c.bf16 %v742, %v740
    %v1467 = vpack.c.bf16 %v743, %v741
    %v1468 = vpack.c.bf16 %v746, %v744
    %v1469 = vpack.c.bf16 %v747, %v745
    %v1470 = vpack.c.bf16 %v750, %v748
    %v1471 = vpack.c.bf16 %v751, %v749
    %v1472 = vpack.c.bf16 %v754, %v752
    %v1473 = vpack.c.bf16 %v755, %v753
    %v1474 = vpack.c.bf16 %v758, %v756
    %v1475 = vpack.c.bf16 %v759, %v757
    %v1476 = vpack.c.bf16 %v762, %v760
    %v1477 = vpack.c.bf16 %v763, %v761
    %v1478 = vpack.c.bf16 %v766, %v764
    %v1479 = vpack.c.bf16 %v767, %v765
    %v1480 = vpack.c.bf16 %v770, %v768
    %v1481 = vpack.c.bf16 %v771, %v769
    %v1482 = vpack.c.bf16 %v774, %v772
    %v1483 = vpack.c.bf16 %v775, %v773
    %v1484 = vpack.c.bf16 %v778, %v776
    %v1485 = vpack.c.bf16 %v779, %v777
    %v1486 = vpack.c.bf16 %v782, %v780
    %v1487 = vpack.c.bf16 %v783, %v781
    %v1488 = vpack.c.bf16 %v786, %v784
    %v1489 = vpack.c.bf16 %v787, %v785
    %v1490 = vpack.c.bf16 %v790, %v788
    %v1491 = vpack.c.bf16 %v791, %v789
    %v1492 = vpack.c.bf16 %v794, %v792
    %v1493 = vpack.c.bf16 %v795, %v793
    %v1494 = vpack.c.bf16 %v798, %v796
    %v1495 = vpack.c.bf16 %v799, %v797
    %v1496 = vpack.c.bf16 %v802, %v800
    %v1497 = vpack.c.bf16 %v803, %v801
    %v1498 = vpack.c.bf16 %v806, %v804
    %v1499 = vpack.c.bf16 %v807, %v805
    %v1500 = vpack.c.bf16 %v810, %v808
    %v1501 = vpack.c.bf16 %v811, %v809
    %v1502 = vpack.c.bf16 %v814, %v812
    %v1503 = vpack.c.bf16 %v815, %v813
    %v1504 = vpack.c.bf16 %v818, %v816
    %v1505 = vpack.c.bf16 %v819, %v817
    %v1506 = vpack.c.bf16 %v822, %v820
    %v1507 = vpack.c.bf16 %v823, %v821
    %v1508 = vpack.c.bf16 %v826, %v824
    %v1509 = vpack.c.bf16 %v827, %v825
    %v1510 = vpack.c.bf16 %v830, %v828
    %v1511 = vpack.c.bf16 %v831, %v829
    %v1512 = vpack.c.bf16 %v834, %v832
    %v1513 = vpack.c.bf16 %v835, %v833
    %v1514 = vpack.c.bf16 %v838, %v836
    %v1515 = vpack.c.bf16 %v839, %v837
    %v1516 = vpack.c.bf16 %v842, %v840
    %v1517 = vpack.c.bf16 %v843, %v841
    %v1518 = vpack.c.bf16 %v846, %v844
    %v1519 = vpack.c.bf16 %v847, %v845
    %v1520 = vpack.c.bf16 %v850, %v848
    %v1521 = vpack.c.bf16 %v851, %v849
    %v1522 = vpack.c.bf16 %v854, %v852
    %v1523 = vpack.c.bf16 %v855, %v853
    %v1524 = vpack.c.bf16 %v858, %v856
    %v1525 = vpack.c.bf16 %v859, %v857
    %v1526 = vpack.c.bf16 %v862, %v860
    %v1527 = vpack.c.bf16 %v863, %v861
    %v1528 = vpack.c.bf16 %v866, %v864
    %v1529 = vpack.c.bf16 %v867, %v865
    %v1530 = vpack.c.bf16 %v870, %v868
    %v1531 = vpack.c.bf16 %v871, %v869
    %v1532 = vpack.c.bf16 %v874, %v872
    %v1533 = vpack.c.bf16 %v875, %v873
    %v1534 = vpack.c.bf16 %v878, %v876
    %v1535 = vpack.c.bf16 %v879, %v877
    %v1536 = vpack.c.bf16 %v882, %v880
    %v1537 = vpack.c.bf16 %v883, %v881
    %v1538 = vpack.c.bf16 %v886, %v884
    %v1539 = vpack.c.bf16 %v887, %v885
    %v1540 = vpack.c.bf16 %v890, %v888
    %v1541 = vpack.c.bf16 %v891, %v889
    %v1542 = vpack.c.bf16 %v894, %v892
    %v1543 = vpack.c.bf16 %v895, %v893
    %v1544 = vpack.c.bf16 %v898, %v896
    %v1545 = vpack.c.bf16 %v899, %v897
    %v1546 = vpack.c.bf16 %v902, %v900
    %v1547 = vpack.c.bf16 %v903, %v901
    %v1548 = vpack.c.bf16 %v906, %v904
    %v1549 = vpack.c.bf16 %v907, %v905
    %v1550 = vpack.c.bf16 %v910, %v908
    %v1551 = vpack.c.bf16 %v911, %v909
    %v1552 = vpack.c.bf16 %v914, %v912
    %v1553 = vpack.c.bf16 %v915, %v913
    %v1554 = vpack.c.bf16 %v918, %v916
    %v1555 = vpack.c.bf16 %v919, %v917
    %v1556 = vpack.c.bf16 %v922, %v920
    %v1557 = vpack.c.bf16 %v923, %v921
    %v1558 = vpack.c.bf16 %v926, %v924
    %v1559 = vpack.c.bf16 %v927, %v925
    %v1560 = vpack.c.bf16 %v930, %v928
    %v1561 = vpack.c.bf16 %v931, %v929
    %v1562 = vpack.c.bf16 %v934, %v932
    %v1563 = vpack.c.bf16 %v935, %v933
    %v1564 = vpack.c.bf16 %v938, %v936
    %v1565 = vpack.c.bf16 %v939, %v937
    %v1566 = vpack.c.bf16 %v942, %v940
    %v1567 = vpack.c.bf16 %v943, %v941
    %v1568 = vpack.c.bf16 %v946, %v944
    %v1569 = vpack.c.bf16 %v947, %v945
    %v1570 = vpack.c.bf16 %v950, %v948
    %v1571 = vpack.c.bf16 %v951, %v949
    %v1572 = vpack.c.bf16 %v954, %v952
    %v1573 = vpack.c.bf16 %v955, %v953
    %v1574 = vpack.c.bf16 %v958, %v956
    %v1575 = vpack.c.bf16 %v959, %v957
    %v1576 = vpack.c.bf16 %v962, %v960
    %v1577 = vpack.c.bf16 %v963, %v961
    %v1578 = vpack.c.bf16 %v966, %v964
    %v1579 = vpack.c.bf16 %v967, %v965
    %v1580 = vpack.c.bf16 %v970, %v968
    %v1581 = vpack.c.bf16 %v971, %v969
    %v1582 = vpack.c.bf16 %v974, %v972
    %v1583 = vpack.c.bf16 %v975, %v973
    %v1584 = vpack.c.bf16 %v978, %v976
    %v1585 = vpack.c.bf16 %v979, %v977
    %v1586 = vpack.c.bf16 %v982, %v980
    %v1587 = vpack.c.bf16 %v983, %v981
    %v1588 = vpack.c.bf16 %v986, %v984
    %v1589 = vpack.c.bf16 %v987, %v985
    %v1590 = vpack.c.bf16 %v990, %v988
    %v1591 = vpack.c.bf16 %v991, %v989
    %v1592 = vpack.c.bf16 %v994, %v992
    %v1593 = vpack.c.bf16 %v995, %v993
    %v1594 = vpack.c.bf16 %v998, %v996
    %v1595 = vpack.c.bf16 %v999, %v997
    %v1596 = vpack.c.bf16 %v1002, %v1000
    %v1597 = vpack.c.bf16 %v1003, %v1001
    %v1598 = vpack.c.bf16 %v1006, %v1004
    %v1599 = vpack.c.bf16 %v1007, %v1005
    %v1600 = vpack.c.bf16 %v1010, %v1008
    %v1601 = vpack.c.bf16 %v1011, %v1009
    %v1602 = vpack.c.bf16 %v1014, %v1012
    %v1603 = vpack.c.bf16 %v1015, %v1013
    %v1604 = vpack.c.bf16 %v1018, %v1016
    %v1605 = vpack.c.bf16 %v1019, %v1017
    %v1606 = vpack.c.bf16 %v1022, %v1020
    %v1607 = vpack.c.bf16 %v1023, %v1021
    %v1608 = vpack.c.bf16 %v1026, %v1024
    %v1609 = vpack.c.bf16 %v1027, %v1025
    %v1610 = vpack.c.bf16 %v1030, %v1028
    %v1611 = vpack.c.bf16 %v1031, %v1029
    %v1612 = vpack.c.bf16 %v1034, %v1032
    %v1613 = vpack.c.bf16 %v1035, %v1033
    %v1614 = vpack.c.bf16 %v1038, %v1036
    %v1615 = vpack.c.bf16 %v1039, %v1037
    %v1616 = vpack.c.bf16 %v1042, %v1040
    %v1617 = vpack.c.bf16 %v1043, %v1041
    %v1618 = vpack.c.bf16 %v1046, %v1044
    %v1619 = vpack.c.bf16 %v1047, %v1045
    %v1620 = vpack.c.bf16 %v1050, %v1048
    %v1621 = vpack.c.bf16 %v1051, %v1049
    %v1622 = vpack.c.bf16 %v1054, %v1052
    %v1623 = vpack.c.bf16 %v1055, %v1053
    %v1624 = vpack.c.bf16 %v1058, %v1056
    %v1625 = vpack.c.bf16 %v1059, %v1057
    %v1626 = vpack.c.bf16 %v1062, %v1060
    %v1627 = vpack.c.bf16 %v1063, %v1061
    %v1628 = vpack.c.bf16 %v1066, %v1064
    %v1629 = vpack.c.bf16 %v1067, %v1065
    %v1630 = vpack.c.bf16 %v1070, %v1068
    %v1631 = vpack.c.bf16 %v1071, %v1069
    %v1632 = vpack.c.bf16 %v1074, %v1072
    %v1633 = vpack.c.bf16 %v1075, %v1073
    %v1634 = vpack.c.bf16 %v1078, %v1076
    %v1635 = vpack.c.bf16 %v1079, %v1077
    %v1636 = vpack.c.bf16 %v1082, %v1080
    %v1637 = vpack.c.bf16 %v1083, %v1081
    %v1638 = vpack.c.bf16 %v1086, %v1084
    %v1639 = vpack.c.bf16 %v1087, %v1085
    %v1640 = vpack.c.bf16 %v1090, %v1088
    %v1641 = vpack.c.bf16 %v1091, %v1089
    %v1642 = vpack.c.bf16 %v1094, %v1092
    %v1643 = vpack.c.bf16 %v1095, %v1093
    %v1644 = vpack.c.bf16 %v1098, %v1096
    %v1645 = vpack.c.bf16 %v1099, %v1097
    %v1646 = vpack.c.bf16 %v1102, %v1100
    %v1647 = vpack.c.bf16 %v1103, %v1101
    %v1648 = vpack.c.bf16 %v1106, %v1104
    %v1649 = vpack.c.bf16 %v1107, %v1105
    %v1650 = vpack.c.bf16 %v1110, %v1108
    %v1651 = vpack.c.bf16 %v1111, %v1109
    %v1652 = vpack.c.bf16 %v1114, %v1112
    %v1653 = vpack.c.bf16 %v1115, %v1113
    %v1654 = vpack.c.bf16 %v1118, %v1116
    %v1655 = vpack.c.bf16 %v1119, %v1117
    %v1656 = vpack.c.bf16 %v1122, %v1120
    %v1657 = vpack.c.bf16 %v1123, %v1121
    %v1658 = vpack.c.bf16 %v1126, %v1124
    %v1659 = vpack.c.bf16 %v1127, %v1125
    %v1660 = vpack.c.bf16 %v1130, %v1128
    %v1661 = vpack.c.bf16 %v1131, %v1129
    %v1662 = vpack.c.bf16 %v1134, %v1132
    %v1663 = vpack.c.bf16 %v1135, %v1133
    %v1664 = vpack.c.bf16 %v1138, %v1136
    %v1665 = vpack.c.bf16 %v1139, %v1137
    %v1666 = vpack.c.bf16 %v1142, %v1140
    %v1667 = vpack.c.bf16 %v1143, %v1141
    %v1668 = vpack.c.bf16 %v1146, %v1144
    %v1669 = vpack.c.bf16 %v1147, %v1145
    %v1670 = vpack.c.bf16 %v1150, %v1148
    %v1671 = vpack.c.bf16 %v1151, %v1149
    %v1672 = vpack.c.bf16 %v1154, %v1152
    %v1673 = vpack.c.bf16 %v1155, %v1153
    %v1674 = vpack.c.bf16 %v1158, %v1156
    %v1675 = vpack.c.bf16 %v1159, %v1157
    %v1676 = vpack.c.bf16 %v1162, %v1160
    %v1677 = vpack.c.bf16 %v1163, %v1161
    %v1678 = vpack.c.bf16 %v1166, %v1164
    %v1679 = vpack.c.bf16 %v1167, %v1165
    %v1680 = vld [vmem:[#allocation6] sm:$0x3]
    %v1682 = vlaneseq
    %v1683 = vshrl.u32 %v1682, 7
    %v1684 = vsub.s32 0, %v1683
    %v1685 = vrot.slane %v1680, %v1684
    %v1686 = vlaneseq
    %v1687 = vshrl.u32 %v1686, 7
    %v1688 = vsub.s32 1, %v1687
    %v1689 = vrot.slane %v1680, %v1688
    %1692 = vmatprep.subr.bf16.mxu0 %v1169
    %1693 = vmatpush1.bf16.msra.mxu0 %v1168
    %1694 = vmatprep.subr.bf16.mxu0 %v1171
    %1695 = vmatpush1.bf16.msra.mxu0 %v1170
    %1696 = vmatprep.subr.bf16.mxu0 %v1173
    %1697 = vmatpush1.bf16.msra.mxu0 %v1172
    %1698 = vmatprep.subr.bf16.mxu0 %v1175
    %1699 = vmatpush1.bf16.msra.mxu0 %v1174
    %1700 = vmatprep.subr.bf16.mxu0 %v1177
    %1701 = vmatpush1.bf16.msra.mxu0 %v1176
    %1702 = vmatprep.subr.bf16.mxu0 %v1179
    %1703 = vmatpush1.bf16.msra.mxu0 %v1178
    %1704 = vmatprep.subr.bf16.mxu0 %v1181
    %1705 = vmatpush1.bf16.msra.mxu0 %v1180
    %1706 = vmatprep.subr.bf16.mxu0 %v1183
    %1707 = vmatpush1.bf16.msra.mxu0 %v1182
    %1708 = vmatprep.subr.bf16.mxu0 %v1185
    %1709 = vmatpush1.bf16.msra.mxu0 %v1184
    %1710 = vmatprep.subr.bf16.mxu0 %v1187
    %1711 = vmatpush1.bf16.msra.mxu0 %v1186
    %1712 = vmatprep.subr.bf16.mxu0 %v1189
    %1713 = vmatpush1.bf16.msra.mxu0 %v1188
    %1714 = vmatprep.subr.bf16.mxu0 %v1191
    %1715 = vmatpush1.bf16.msra.mxu0 %v1190
    %1716 = vmatprep.subr.bf16.mxu0 %v1193
    %1717 = vmatpush1.bf16.msra.mxu0 %v1192
    %1718 = vmatprep.subr.bf16.mxu0 %v1195
    %1719 = vmatpush1.bf16.msra.mxu0 %v1194
    %1720 = vmatprep.subr.bf16.mxu0 %v1197
    %1721 = vmatpush1.bf16.msra.mxu0 %v1196
    %1722 = vmatprep.subr.bf16.mxu0 %v1199
    %1723 = vmatpush1.bf16.msra.mxu0 %v1198
    %1724 = vmatprep.mubr.bf16.mxu0 %v113
    %1725 = vmatmul.mubr.bf16.gmra.mrb[0].mxu0 %v112
    %v1726 = vpop.f32.mrb[0].mxu0
    %v1727 = vadd.f32 %v1685, %v1726
    %v1728 = vpop.f32.mrb[0].mxu0
    %v1729 = vadd.f32 %v1689, %v1728
    %v1730 = vpop.f32.mrb[0].mxu0
    %v1731 = vpop.f32.mrb[0].mxu0
    %1732 = vdwg.mxu0
    %1733 = vmatprep.subr.bf16.mxu0 %v1201
    %1734 = vmatpush1.bf16.msra.mxu0 %v1200
    %1735 = vmatprep.subr.bf16.mxu0 %v1203
    %1736 = vmatpush1.bf16.msra.mxu0 %v1202
    %1737 = vmatprep.subr.bf16.mxu0 %v1205
    %1738 = vmatpush1.bf16.msra.mxu0 %v1204
    %1739 = vmatprep.subr.bf16.mxu0 %v1207
    %1740 = vmatpush1.bf16.msra.mxu0 %v1206
    %1741 = vmatprep.subr.bf16.mxu0 %v1209
    %1742 = vmatpush1.bf16.msra.mxu0 %v1208
    %1743 = vmatprep.subr.bf16.mxu0 %v1211
    %1744 = vmatpush1.bf16.msra.mxu0 %v1210
    %1745 = vmatprep.subr.bf16.mxu0 %v1213
    %1746 = vmatpush1.bf16.msra.mxu0 %v1212
    %1747 = vmatprep.subr.bf16.mxu0 %v1215
    %1748 = vmatpush1.bf16.msra.mxu0 %v1214
    %1749 = vmatprep.subr.bf16.mxu0 %v1217
    %1750 = vmatpush1.bf16.msra.mxu0 %v1216
    %1751 = vmatprep.subr.bf16.mxu0 %v1219
    %1752 = vmatpush1.bf16.msra.mxu0 %v1218
    %1753 = vmatprep.subr.bf16.mxu0 %v1221
    %1754 = vmatpush1.bf16.msra.mxu0 %v1220
    %1755 = vmatprep.subr.bf16.mxu0 %v1223
    %1756 = vmatpush1.bf16.msra.mxu0 %v1222
    %1757 = vmatprep.subr.bf16.mxu0 %v1225
    %1758 = vmatpush1.bf16.msra.mxu0 %v1224
    %1759 = vmatprep.subr.bf16.mxu0 %v1227
    %1760 = vmatpush1.bf16.msra.mxu0 %v1226
    %1761 = vmatprep.subr.bf16.mxu0 %v1229
    %1762 = vmatpush1.bf16.msra.mxu0 %v1228
    %1763 = vmatprep.subr.bf16.mxu0 %v1231
    %1764 = vmatpush1.bf16.msra.mxu0 %v1230
    %1765 = vmatprep.mubr.bf16.mxu0 %v115
    %1766 = vmatmul.mubr.bf16.gmra.mrb[0].mxu0 %v114
    %v1767 = vpop.f32.mrb[0].mxu0
    %v1768 = vadd.f32 %v1727, %v1767
    %v1769 = vpop.f32.mrb[0].mxu0
    %v1770 = vadd.f32 %v1729, %v1769
    %v1771 = vpop.f32.mrb[0].mxu0
    %v1772 = vpop.f32.mrb[0].mxu0
    %1773 = vdwg.mxu0
    %1774 = vmatprep.subr.bf16.mxu0 %v1233
    %1775 = vmatpush1.bf16.msra.mxu0 %v1232
    %1776 = vmatprep.subr.bf16.mxu0 %v1235
    %1777 = vmatpush1.bf16.msra.mxu0 %v1234
    %1778 = vmatprep.subr.bf16.mxu0 %v1237
    %1779 = vmatpush1.bf16.msra.mxu0 %v1236
    %1780 = vmatprep.subr.bf16.mxu0 %v1239
    %1781 = vmatpush1.bf16.msra.mxu0 %v1238
    %1782 = vmatprep.subr.bf16.mxu0 %v1241
    %1783 = vmatpush1.bf16.msra.mxu0 %v1240
    %1784 = vmatprep.subr.bf16.mxu0 %v1243
    %1785 = vmatpush1.bf16.msra.mxu0 %v1242
    %1786 = vmatprep.subr.bf16.mxu0 %v1245
    %1787 = vmatpush1.bf16.msra.mxu0 %v1244
    %1788 = vmatprep.subr.bf16.mxu0 %v1247
    %1789 = vmatpush1.bf16.msra.mxu0 %v1246
    %1790 = vmatprep.subr.bf16.mxu0 %v1249
    %1791 = vmatpush1.bf16.msra.mxu0 %v1248
    %1792 = vmatprep.subr.bf16.mxu0 %v1251
    %1793 = vmatpush1.bf16.msra.mxu0 %v1250
    %1794 = vmatprep.subr.bf16.mxu0 %v1253
    %1795 = vmatpush1.bf16.msra.mxu0 %v1252
    %1796 = vmatprep.subr.bf16.mxu0 %v1255
    %1797 = vmatpush1.bf16.msra.mxu0 %v1254
    %1798 = vmatprep.subr.bf16.mxu0 %v1257
    %1799 = vmatpush1.bf16.msra.mxu0 %v1256
    %1800 = vmatprep.subr.bf16.mxu0 %v1259
    %1801 = vmatpush1.bf16.msra.mxu0 %v1258
    %1802 = vmatprep.subr.bf16.mxu0 %v1261
    %1803 = vmatpush1.bf16.msra.mxu0 %v1260
    %1804 = vmatprep.subr.bf16.mxu0 %v1263
    %1805 = vmatpush1.bf16.msra.mxu0 %v1262
    %1806 = vmatprep.mubr.bf16.mxu0 %v117
    %1807 = vmatmul.mubr.bf16.gmra.mrb[0].mxu0 %v116
    %v1808 = vpop.f32.mrb[0].mxu0
    %v1809 = vadd.f32 %v1768, %v1808
    %v1810 = vpop.f32.mrb[0].mxu0
    %v1811 = vadd.f32 %v1770, %v1810
    %v1812 = vpop.f32.mrb[0].mxu0
    %v1813 = vpop.f32.mrb[0].mxu0
    %1814 = vdwg.mxu0
    %1815 = vmatprep.subr.bf16.mxu0 %v1265
    %1816 = vmatpush1.bf16.msra.mxu0 %v1264
    %1817 = vmatprep.subr.bf16.mxu0 %v1267
    %1818 = vmatpush1.bf16.msra.mxu0 %v1266
    %1819 = vmatprep.subr.bf16.mxu0 %v1269
    %1820 = vmatpush1.bf16.msra.mxu0 %v1268
    %1821 = vmatprep.subr.bf16.mxu0 %v1271
    %1822 = vmatpush1.bf16.msra.mxu0 %v1270
    %1823 = vmatprep.subr.bf16.mxu0 %v1273
    %1824 = vmatpush1.bf16.msra.mxu0 %v1272
    %1825 = vmatprep.subr.bf16.mxu0 %v1275
    %1826 = vmatpush1.bf16.msra.mxu0 %v1274
    %1827 = vmatprep.subr.bf16.mxu0 %v1277
    %1828 = vmatpush1.bf16.msra.mxu0 %v1276
    %1829 = vmatprep.subr.bf16.mxu0 %v1279
    %1830 = vmatpush1.bf16.msra.mxu0 %v1278
    %1831 = vmatprep.subr.bf16.mxu0 %v1281
    %1832 = vmatpush1.bf16.msra.mxu0 %v1280
    %1833 = vmatprep.subr.bf16.mxu0 %v1283
    %1834 = vmatpush1.bf16.msra.mxu0 %v1282
    %1835 = vmatprep.subr.bf16.mxu0 %v1285
    %1836 = vmatpush1.bf16.msra.mxu0 %v1284
    %1837 = vmatprep.subr.bf16.mxu0 %v1287
    %1838 = vmatpush1.bf16.msra.mxu0 %v1286
    %1839 = vmatprep.subr.bf16.mxu0 %v1289
    %1840 = vmatpush1.bf16.msra.mxu0 %v1288
    %1841 = vmatprep.subr.bf16.mxu0 %v1291
    %1842 = vmatpush1.bf16.msra.mxu0 %v1290
    %1843 = vmatprep.subr.bf16.mxu0 %v1293
    %1844 = vmatpush1.bf16.msra.mxu0 %v1292
    %1845 = vmatprep.subr.bf16.mxu0 %v1295
    %1846 = vmatpush1.bf16.msra.mxu0 %v1294
    %1847 = vmatprep.mubr.bf16.mxu0 %v119
    %1848 = vmatmul.mubr.bf16.gmra.mrb[0].mxu0 %v118
    %v1849 = vpop.f32.mrb[0].mxu0
    %v1850 = vadd.f32 %v1809, %v1849
    %v1851 = vpop.f32.mrb[0].mxu0
    %v1852 = vadd.f32 %v1811, %v1851
    %v1853 = vpop.f32.mrb[0].mxu0
    %v1854 = vpop.f32.mrb[0].mxu0
    %1855 = vdwg.mxu0
    %1856 = vmatprep.subr.bf16.mxu0 %v1297
    %1857 = vmatpush1.bf16.msra.mxu0 %v1296
    %1858 = vmatprep.subr.bf16.mxu0 %v1299
    %1859 = vmatpush1.bf16.msra.mxu0 %v1298
    %1860 = vmatprep.subr.bf16.mxu0 %v1301
    %1861 = vmatpush1.bf16.msra.mxu0 %v1300
    %1862 = vmatprep.subr.bf16.mxu0 %v1303
    %1863 = vmatpush1.bf16.msra.mxu0 %v1302
    %1864 = vmatprep.subr.bf16.mxu0 %v1305
    %1865 = vmatpush1.bf16.msra.mxu0 %v1304
    %1866 = vmatprep.subr.bf16.mxu0 %v1307
    %1867 = vmatpush1.bf16.msra.mxu0 %v1306
    %1868 = vmatprep.subr.bf16.mxu0 %v1309
    %1869 = vmatpush1.bf16.msra.mxu0 %v1308
    %1870 = vmatprep.subr.bf16.mxu0 %v1311
    %1871 = vmatpush1.bf16.msra.mxu0 %v1310
    %1872 = vmatprep.subr.bf16.mxu0 %v1313
    %1873 = vmatpush1.bf16.msra.mxu0 %v1312
    %1874 = vmatprep.subr.bf16.mxu0 %v1315
    %1875 = vmatpush1.bf16.msra.mxu0 %v1314
    %1876 = vmatprep.subr.bf16.mxu0 %v1317
    %1877 = vmatpush1.bf16.msra.mxu0 %v1316
    %1878 = vmatprep.subr.bf16.mxu0 %v1319
    %1879 = vmatpush1.bf16.msra.mxu0 %v1318
    %1880 = vmatprep.subr.bf16.mxu0 %v1321
    %1881 = vmatpush1.bf16.msra.mxu0 %v1320
    %1882 = vmatprep.subr.bf16.mxu0 %v1323
    %1883 = vmatpush1.bf16.msra.mxu0 %v1322
    %1884 = vmatprep.subr.bf16.mxu0 %v1325
    %1885 = vmatpush1.bf16.msra.mxu0 %v1324
    %1886 = vmatprep.subr.bf16.mxu0 %v1327
    %1887 = vmatpush1.bf16.msra.mxu0 %v1326
    %1888 = vmatprep.mubr.bf16.mxu0 %v121
    %1889 = vmatmul.mubr.bf16.gmra.mrb[0].mxu0 %v120
    %v1890 = vpop.f32.mrb[0].mxu0
    %v1891 = vadd.f32 %v1850, %v1890
    %v1892 = vpop.f32.mrb[0].mxu0
    %v1893 = vadd.f32 %v1852, %v1892
    %v1894 = vpop.f32.mrb[0].mxu0
    %v1895 = vpop.f32.mrb[0].mxu0
    %1896 = vdwg.mxu0
    %1897 = vmatprep.subr.bf16.mxu0 %v1329
    %1898 = vmatpush1.bf16.msra.mxu0 %v1328
    %1899 = vmatprep.subr.bf16.mxu0 %v1331
    %1900 = vmatpush1.bf16.msra.mxu0 %v1330
    %1901 = vmatprep.subr.bf16.mxu0 %v1333
    %1902 = vmatpush1.bf16.msra.mxu0 %v1332
    %1903 = vmatprep.subr.bf16.mxu0 %v1335
    %1904 = vmatpush1.bf16.msra.mxu0 %v1334
    %1905 = vmatprep.subr.bf16.mxu0 %v1337
    %1906 = vmatpush1.bf16.msra.mxu0 %v1336
    %1907 = vmatprep.subr.bf16.mxu0 %v1339
    %1908 = vmatpush1.bf16.msra.mxu0 %v1338
    %1909 = vmatprep.subr.bf16.mxu0 %v1341
    %1910 = vmatpush1.bf16.msra.mxu0 %v1340
    %1911 = vmatprep.subr.bf16.mxu0 %v1343
    %1912 = vmatpush1.bf16.msra.mxu0 %v1342
    %1913 = vmatprep.subr.bf16.mxu0 %v1345
    %1914 = vmatpush1.bf16.msra.mxu0 %v1344
    %1915 = vmatprep.subr.bf16.mxu0 %v1347
    %1916 = vmatpush1.bf16.msra.mxu0 %v1346
    %1917 = vmatprep.subr.bf16.mxu0 %v1349
    %1918 = vmatpush1.bf16.msra.mxu0 %v1348
    %1919 = vmatprep.subr.bf16.mxu0 %v1351
    %1920 = vmatpush1.bf16.msra.mxu0 %v1350
    %1921 = vmatprep.subr.bf16.mxu0 %v1353
    %1922 = vmatpush1.bf16.msra.mxu0 %v1352
    %1923 = vmatprep.subr.bf16.mxu0 %v1355
    %1924 = vmatpush1.bf16.msra.mxu0 %v1354
    %1925 = vmatprep.subr.bf16.mxu0 %v1357
    %1926 = vmatpush1.bf16.msra.mxu0 %v1356
    %1927 = vmatprep.subr.bf16.mxu0 %v1359
    %1928 = vmatpush1.bf16.msra.mxu0 %v1358
    %1929 = vmatprep.mubr.bf16.mxu0 %v123
    %1930 = vmatmul.mubr.bf16.gmra.mrb[0].mxu0 %v122
    %v1931 = vpop.f32.mrb[0].mxu0
    %v1932 = vadd.f32 %v1891, %v1931
    %v1933 = vpop.f32.mrb[0].mxu0
    %v1934 = vadd.f32 %v1893, %v1933
    %v1935 = vpop.f32.mrb[0].mxu0
    %v1936 = vpop.f32.mrb[0].mxu0
    %1937 = vdwg.mxu0
    %1938 = vmatprep.subr.bf16.mxu0 %v1361
    %1939 = vmatpush1.bf16.msra.mxu0 %v1360
    %1940 = vmatprep.subr.bf16.mxu0 %v1363
    %1941 = vmatpush1.bf16.msra.mxu0 %v1362
    %1942 = vmatprep.subr.bf16.mxu0 %v1365
    %1943 = vmatpush1.bf16.msra.mxu0 %v1364
    %1944 = vmatprep.subr.bf16.mxu0 %v1367
    %1945 = vmatpush1.bf16.msra.mxu0 %v1366
    %1946 = vmatprep.subr.bf16.mxu0 %v1369
    %1947 = vmatpush1.bf16.msra.mxu0 %v1368
    %1948 = vmatprep.subr.bf16.mxu0 %v1371
    %1949 = vmatpush1.bf16.msra.mxu0 %v1370
    %1950 = vmatprep.subr.bf16.mxu0 %v1373
    %1951 = vmatpush1.bf16.msra.mxu0 %v1372
    %1952 = vmatprep.subr.bf16.mxu0 %v1375
    %1953 = vmatpush1.bf16.msra.mxu0 %v1374
    %1954 = vmatprep.subr.bf16.mxu0 %v1377
    %1955 = vmatpush1.bf16.msra.mxu0 %v1376
    %1956 = vmatprep.subr.bf16.mxu0 %v1379
    %1957 = vmatpush1.bf16.msra.mxu0 %v1378
    %1958 = vmatprep.subr.bf16.mxu0 %v1381
    %1959 = vmatpush1.bf16.msra.mxu0 %v1380
    %1960 = vmatprep.subr.bf16.mxu0 %v1383
    %1961 = vmatpush1.bf16.msra.mxu0 %v1382
    %1962 = vmatprep.subr.bf16.mxu0 %v1385
    %1963 = vmatpush1.bf16.msra.mxu0 %v1384
    %1964 = vmatprep.subr.bf16.mxu0 %v1387
    %1965 = vmatpush1.bf16.msra.mxu0 %v1386
    %1966 = vmatprep.subr.bf16.mxu0 %v1389
    %1967 = vmatpush1.bf16.msra.mxu0 %v1388
    %1968 = vmatprep.subr.bf16.mxu0 %v1391
    %1969 = vmatpush1.bf16.msra.mxu0 %v1390
    %1970 = vmatprep.mubr.bf16.mxu0 %v125
    %1971 = vmatmul.mubr.bf16.gmra.mrb[0].mxu0 %v124
    %v1972 = vpop.f32.mrb[0].mxu0
    %v1973 = vadd.f32 %v1932, %v1972
    %v1974 = vpop.f32.mrb[0].mxu0
    %v1975 = vadd.f32 %v1934, %v1974
    %v1976 = vpop.f32.mrb[0].mxu0
    %v1977 = vpop.f32.mrb[0].mxu0
    %1978 = vdwg.mxu0
    %1979 = vmatprep.subr.bf16.mxu0 %v1393
    %1980 = vmatpush1.bf16.msra.mxu0 %v1392
    %1981 = vmatprep.subr.bf16.mxu0 %v1395
    %1982 = vmatpush1.bf16.msra.mxu0 %v1394
    %1983 = vmatprep.subr.bf16.mxu0 %v1397
    %1984 = vmatpush1.bf16.msra.mxu0 %v1396
    %1985 = vmatprep.subr.bf16.mxu0 %v1399
    %1986 = vmatpush1.bf16.msra.mxu0 %v1398
    %1987 = vmatprep.subr.bf16.mxu0 %v1401
    %1988 = vmatpush1.bf16.msra.mxu0 %v1400
    %1989 = vmatprep.subr.bf16.mxu0 %v1403
    %1990 = vmatpush1.bf16.msra.mxu0 %v1402
    %1991 = vmatprep.subr.bf16.mxu0 %v1405
    %1992 = vmatpush1.bf16.msra.mxu0 %v1404
    %1993 = vmatprep.subr.bf16.mxu0 %v1407
    %1994 = vmatpush1.bf16.msra.mxu0 %v1406
    %1995 = vmatprep.subr.bf16.mxu0 %v1409
    %1996 = vmatpush1.bf16.msra.mxu0 %v1408
    %1997 = vmatprep.subr.bf16.mxu0 %v1411
    %1998 = vmatpush1.bf16.msra.mxu0 %v1410
    %1999 = vmatprep.subr.bf16.mxu0 %v1413
    %2000 = vmatpush1.bf16.msra.mxu0 %v1412
    %2001 = vmatprep.subr.bf16.mxu0 %v1415
    %2002 = vmatpush1.bf16.msra.mxu0 %v1414
    %2003 = vmatprep.subr.bf16.mxu0 %v1417
    %2004 = vmatpush1.bf16.msra.mxu0 %v1416
    %2005 = vmatprep.subr.bf16.mxu0 %v1419
    %2006 = vmatpush1.bf16.msra.mxu0 %v1418
    %2007 = vmatprep.subr.bf16.mxu0 %v1421
    %2008 = vmatpush1.bf16.msra.mxu0 %v1420
    %2009 = vmatprep.subr.bf16.mxu0 %v1423
    %2010 = vmatpush1.bf16.msra.mxu0 %v1422
    %2011 = vmatprep.mubr.bf16.mxu0 %v127
    %2012 = vmatmul.mubr.bf16.gmra.mrb[0].mxu0 %v126
    %v2013 = vpop.f32.mrb[0].mxu0
    %v2014 = vadd.f32 %v1973, %v2013
    %v2015 = vpop.f32.mrb[0].mxu0
    %v2016 = vadd.f32 %v1975, %v2015
    %v2017 = vpop.f32.mrb[0].mxu0
    %v2018 = vpop.f32.mrb[0].mxu0
    %2019 = vdwg.mxu0
    %2020 = vmatprep.subr.bf16.mxu0 %v1425
    %2021 = vmatpush1.bf16.msra.mxu0 %v1424
    %2022 = vmatprep.subr.bf16.mxu0 %v1427
    %2023 = vmatpush1.bf16.msra.mxu0 %v1426
    %2024 = vmatprep.subr.bf16.mxu0 %v1429
    %2025 = vmatpush1.bf16.msra.mxu0 %v1428
    %2026 = vmatprep.subr.bf16.mxu0 %v1431
    %2027 = vmatpush1.bf16.msra.mxu0 %v1430
    %2028 = vmatprep.subr.bf16.mxu0 %v1433
    %2029 = vmatpush1.bf16.msra.mxu0 %v1432
    %2030 = vmatprep.subr.bf16.mxu0 %v1435
    %2031 = vmatpush1.bf16.msra.mxu0 %v1434
    %2032 = vmatprep.subr.bf16.mxu0 %v1437
    %2033 = vmatpush1.bf16.msra.mxu0 %v1436
    %2034 = vmatprep.subr.bf16.mxu0 %v1439
    %2035 = vmatpush1.bf16.msra.mxu0 %v1438
    %2036 = vmatprep.subr.bf16.mxu0 %v1441
    %2037 = vmatpush1.bf16.msra.mxu0 %v1440
    %2038 = vmatprep.subr.bf16.mxu0 %v1443
    %2039 = vmatpush1.bf16.msra.mxu0 %v1442
    %2040 = vmatprep.subr.bf16.mxu0 %v1445
    %2041 = vmatpush1.bf16.msra.mxu0 %v1444
    %2042 = vmatprep.subr.bf16.mxu0 %v1447
    %2043 = vmatpush1.bf16.msra.mxu0 %v1446
    %2044 = vmatprep.subr.bf16.mxu0 %v1449
    %2045 = vmatpush1.bf16.msra.mxu0 %v1448
    %2046 = vmatprep.subr.bf16.mxu0 %v1451
    %2047 = vmatpush1.bf16.msra.mxu0 %v1450
    %2048 = vmatprep.subr.bf16.mxu0 %v1453
    %2049 = vmatpush1.bf16.msra.mxu0 %v1452
    %2050 = vmatprep.subr.bf16.mxu0 %v1455
    %2051 = vmatpush1.bf16.msra.mxu0 %v1454
    %2052 = vmatprep.mubr.bf16.mxu0 %v129
    %2053 = vmatmul.mubr.bf16.gmra.mrb[0].mxu0 %v128
    %v2054 = vpop.f32.mrb[0].mxu0
    %v2055 = vadd.f32 %v2014, %v2054
    %v2056 = vpop.f32.mrb[0].mxu0
    %v2057 = vadd.f32 %v2016, %v2056
    %v2058 = vpop.f32.mrb[0].mxu0
    %v2059 = vpop.f32.mrb[0].mxu0
    %2060 = vdwg.mxu0
    %2061 = vmatprep.subr.bf16.mxu0 %v1457
    %2062 = vmatpush1.bf16.msra.mxu0 %v1456
    %2063 = vmatprep.subr.bf16.mxu0 %v1459
    %2064 = vmatpush1.bf16.msra.mxu0 %v1458
    %2065 = vmatprep.subr.bf16.mxu0 %v1461
    %2066 = vmatpush1.bf16.msra.mxu0 %v1460
    %2067 = vmatprep.subr.bf16.mxu0 %v1463
    %2068 = vmatpush1.bf16.msra.mxu0 %v1462
    %2069 = vmatprep.subr.bf16.mxu0 %v1465
    %2070 = vmatpush1.bf16.msra.mxu0 %v1464
    %2071 = vmatprep.subr.bf16.mxu0 %v1467
    %2072 = vmatpush1.bf16.msra.mxu0 %v1466
    %2073 = vmatprep.subr.bf16.mxu0 %v1469
    %2074 = vmatpush1.bf16.msra.mxu0 %v1468
    %2075 = vmatprep.subr.bf16.mxu0 %v1471
    %2076 = vmatpush1.bf16.msra.mxu0 %v1470
    %2077 = vmatprep.subr.bf16.mxu0 %v1473
    %2078 = vmatpush1.bf16.msra.mxu0 %v1472
    %2079 = vmatprep.subr.bf16.mxu0 %v1475
    %2080 = vmatpush1.bf16.msra.mxu0 %v1474
    %2081 = vmatprep.subr.bf16.mxu0 %v1477
    %2082 = vmatpush1.bf16.msra.mxu0 %v1476
    %2083 = vmatprep.subr.bf16.mxu0 %v1479
    %2084 = vmatpush1.bf16.msra.mxu0 %v1478
    %2085 = vmatprep.subr.bf16.mxu0 %v1481
    %2086 = vmatpush1.bf16.msra.mxu0 %v1480
    %2087 = vmatprep.subr.bf16.mxu0 %v1483
    %2088 = vmatpush1.bf16.msra.mxu0 %v1482
    %2089 = vmatprep.subr.bf16.mxu0 %v1485
    %2090 = vmatpush1.bf16.msra.mxu0 %v1484
    %2091 = vmatprep.subr.bf16.mxu0 %v1487
    %2092 = vmatpush1.bf16.msra.mxu0 %v1486
    %2093 = vmatprep.mubr.bf16.mxu0 %v131
    %2094 = vmatmul.mubr.bf16.gmra.mrb[0].mxu0 %v130
    %v2095 = vpop.f32.mrb[0].mxu0
    %v2096 = vadd.f32 %v2055, %v2095
    %v2097 = vpop.f32.mrb[0].mxu0
    %v2098 = vadd.f32 %v2057, %v2097
    %v2099 = vpop.f32.mrb[0].mxu0
    %v2100 = vpop.f32.mrb[0].mxu0
    %2101 = vdwg.mxu0
    %2102 = vmatprep.subr.bf16.mxu0 %v1489
    %2103 = vmatpush1.bf16.msra.mxu0 %v1488
    %2104 = vmatprep.subr.bf16.mxu0 %v1491
    %2105 = vmatpush1.bf16.msra.mxu0 %v1490
    %2106 = vmatprep.subr.bf16.mxu0 %v1493
    %2107 = vmatpush1.bf16.msra.mxu0 %v1492
    %2108 = vmatprep.subr.bf16.mxu0 %v1495
    %2109 = vmatpush1.bf16.msra.mxu0 %v1494
    %2110 = vmatprep.subr.bf16.mxu0 %v1497
    %2111 = vmatpush1.bf16.msra.mxu0 %v1496
    %2112 = vmatprep.subr.bf16.mxu0 %v1499
    %2113 = vmatpush1.bf16.msra.mxu0 %v1498
    %2114 = vmatprep.subr.bf16.mxu0 %v1501
    %2115 = vmatpush1.bf16.msra.mxu0 %v1500
    %2116 = vmatprep.subr.bf16.mxu0 %v1503
    %2117 = vmatpush1.bf16.msra.mxu0 %v1502
    %2118 = vmatprep.subr.bf16.mxu0 %v1505
    %2119 = vmatpush1.bf16.msra.mxu0 %v1504
    %2120 = vmatprep.subr.bf16.mxu0 %v1507
    %2121 = vmatpush1.bf16.msra.mxu0 %v1506
    %2122 = vmatprep.subr.bf16.mxu0 %v1509
    %2123 = vmatpush1.bf16.msra.mxu0 %v1508
    %2124 = vmatprep.subr.bf16.mxu0 %v1511
    %2125 = vmatpush1.bf16.msra.mxu0 %v1510
    %2126 = vmatprep.subr.bf16.mxu0 %v1513
    %2127 = vmatpush1.bf16.msra.mxu0 %v1512
    %2128 = vmatprep.subr.bf16.mxu0 %v1515
    %2129 = vmatpush1.bf16.msra.mxu0 %v1514
    %2130 = vmatprep.subr.bf16.mxu0 %v1517
    %2131 = vmatpush1.bf16.msra.mxu0 %v1516
    %2132 = vmatprep.subr.bf16.mxu0 %v1519
    %2133 = vmatpush1.bf16.msra.mxu0 %v1518
    %2134 = vmatprep.mubr.bf16.mxu0 %v133
    %2135 = vmatmul.mubr.bf16.gmra.mrb[0].mxu0 %v132
    %v2136 = vpop.f32.mrb[0].mxu0
    %v2137 = vadd.f32 %v2096, %v2136
    %v2138 = vpop.f32.mrb[0].mxu0
    %v2139 = vadd.f32 %v2098, %v2138
    %v2140 = vpop.f32.mrb[0].mxu0
    %v2141 = vpop.f32.mrb[0].mxu0
    %2142 = vdwg.mxu0
    %2143 = vmatprep.subr.bf16.mxu0 %v1521
    %2144 = vmatpush1.bf16.msra.mxu0 %v1520
    %2145 = vmatprep.subr.bf16.mxu0 %v1523
    %2146 = vmatpush1.bf16.msra.mxu0 %v1522
    %2147 = vmatprep.subr.bf16.mxu0 %v1525
    %2148 = vmatpush1.bf16.msra.mxu0 %v1524
    %2149 = vmatprep.subr.bf16.mxu0 %v1527
    %2150 = vmatpush1.bf16.msra.mxu0 %v1526
    %2151 = vmatprep.subr.bf16.mxu0 %v1529
    %2152 = vmatpush1.bf16.msra.mxu0 %v1528
    %2153 = vmatprep.subr.bf16.mxu0 %v1531
    %2154 = vmatpush1.bf16.msra.mxu0 %v1530
    %2155 = vmatprep.subr.bf16.mxu0 %v1533
    %2156 = vmatpush1.bf16.msra.mxu0 %v1532
    %2157 = vmatprep.subr.bf16.mxu0 %v1535
    %2158 = vmatpush1.bf16.msra.mxu0 %v1534
    %2159 = vmatprep.subr.bf16.mxu0 %v1537
    %2160 = vmatpush1.bf16.msra.mxu0 %v1536
    %2161 = vmatprep.subr.bf16.mxu0 %v1539
    %2162 = vmatpush1.bf16.msra.mxu0 %v1538
    %2163 = vmatprep.subr.bf16.mxu0 %v1541
    %2164 = vmatpush1.bf16.msra.mxu0 %v1540
    %2165 = vmatprep.subr.bf16.mxu0 %v1543
    %2166 = vmatpush1.bf16.msra.mxu0 %v1542
    %2167 = vmatprep.subr.bf16.mxu0 %v1545
    %2168 = vmatpush1.bf16.msra.mxu0 %v1544
    %2169 = vmatprep.subr.bf16.mxu0 %v1547
    %2170 = vmatpush1.bf16.msra.mxu0 %v1546
    %2171 = vmatprep.subr.bf16.mxu0 %v1549
    %2172 = vmatpush1.bf16.msra.mxu0 %v1548
    %2173 = vmatprep.subr.bf16.mxu0 %v1551
    %2174 = vmatpush1.bf16.msra.mxu0 %v1550
    %2175 = vmatprep.mubr.bf16.mxu0 %v135
    %2176 = vmatmul.mubr.bf16.gmra.mrb[0].mxu0 %v134
    %v2177 = vpop.f32.mrb[0].mxu0
    %v2178 = vadd.f32 %v2137, %v2177
    %v2179 = vpop.f32.mrb[0].mxu0
    %v2180 = vadd.f32 %v2139, %v2179
    %v2181 = vpop.f32.mrb[0].mxu0
    %v2182 = vpop.f32.mrb[0].mxu0
    %2183 = vdwg.mxu0
    %2184 = vmatprep.subr.bf16.mxu0 %v1553
    %2185 = vmatpush1.bf16.msra.mxu0 %v1552
    %2186 = vmatprep.subr.bf16.mxu0 %v1555
    %2187 = vmatpush1.bf16.msra.mxu0 %v1554
    %2188 = vmatprep.subr.bf16.mxu0 %v1557
    %2189 = vmatpush1.bf16.msra.mxu0 %v1556
    %2190 = vmatprep.subr.bf16.mxu0 %v1559
    %2191 = vmatpush1.bf16.msra.mxu0 %v1558
    %2192 = vmatprep.subr.bf16.mxu0 %v1561
    %2193 = vmatpush1.bf16.msra.mxu0 %v1560
    %2194 = vmatprep.subr.bf16.mxu0 %v1563
    %2195 = vmatpush1.bf16.msra.mxu0 %v1562
    %2196 = vmatprep.subr.bf16.mxu0 %v1565
    %2197 = vmatpush1.bf16.msra.mxu0 %v1564
    %2198 = vmatprep.subr.bf16.mxu0 %v1567
    %2199 = vmatpush1.bf16.msra.mxu0 %v1566
    %2200 = vmatprep.subr.bf16.mxu0 %v1569
    %2201 = vmatpush1.bf16.msra.mxu0 %v1568
    %2202 = vmatprep.subr.bf16.mxu0 %v1571
    %2203 = vmatpush1.bf16.msra.mxu0 %v1570
    %2204 = vmatprep.subr.bf16.mxu0 %v1573
    %2205 = vmatpush1.bf16.msra.mxu0 %v1572
    %2206 = vmatprep.subr.bf16.mxu0 %v1575
    %2207 = vmatpush1.bf16.msra.mxu0 %v1574
    %2208 = vmatprep.subr.bf16.mxu0 %v1577
    %2209 = vmatpush1.bf16.msra.mxu0 %v1576
    %2210 = vmatprep.subr.bf16.mxu0 %v1579
    %2211 = vmatpush1.bf16.msra.mxu0 %v1578
    %2212 = vmatprep.subr.bf16.mxu0 %v1581
    %2213 = vmatpush1.bf16.msra.mxu0 %v1580
    %2214 = vmatprep.subr.bf16.mxu0 %v1583
    %2215 = vmatpush1.bf16.msra.mxu0 %v1582
    %2216 = vmatprep.mubr.bf16.mxu0 %v137
    %2217 = vmatmul.mubr.bf16.gmra.mrb[0].mxu0 %v136
    %v2218 = vpop.f32.mrb[0].mxu0
    %v2219 = vadd.f32 %v2178, %v2218
    %v2220 = vpop.f32.mrb[0].mxu0
    %v2221 = vadd.f32 %v2180, %v2220
    %v2222 = vpop.f32.mrb[0].mxu0
    %v2223 = vpop.f32.mrb[0].mxu0
    %2224 = vdwg.mxu0
    %2225 = vmatprep.subr.bf16.mxu0 %v1585
    %2226 = vmatpush1.bf16.msra.mxu0 %v1584
    %2227 = vmatprep.subr.bf16.mxu0 %v1587
    %2228 = vmatpush1.bf16.msra.mxu0 %v1586
    %2229 = vmatprep.subr.bf16.mxu0 %v1589
    %2230 = vmatpush1.bf16.msra.mxu0 %v1588
    %2231 = vmatprep.subr.bf16.mxu0 %v1591
    %2232 = vmatpush1.bf16.msra.mxu0 %v1590
    %2233 = vmatprep.subr.bf16.mxu0 %v1593
    %2234 = vmatpush1.bf16.msra.mxu0 %v1592
    %2235 = vmatprep.subr.bf16.mxu0 %v1595
    %2236 = vmatpush1.bf16.msra.mxu0 %v1594
    %2237 = vmatprep.subr.bf16.mxu0 %v1597
    %2238 = vmatpush1.bf16.msra.mxu0 %v1596
    %2239 = vmatprep.subr.bf16.mxu0 %v1599
    %2240 = vmatpush1.bf16.msra.mxu0 %v1598
    %2241 = vmatprep.subr.bf16.mxu0 %v1601
    %2242 = vmatpush1.bf16.msra.mxu0 %v1600
    %2243 = vmatprep.subr.bf16.mxu0 %v1603
    %2244 = vmatpush1.bf16.msra.mxu0 %v1602
    %2245 = vmatprep.subr.bf16.mxu0 %v1605
    %2246 = vmatpush1.bf16.msra.mxu0 %v1604
    %2247 = vmatprep.subr.bf16.mxu0 %v1607
    %2248 = vmatpush1.bf16.msra.mxu0 %v1606
    %2249 = vmatprep.subr.bf16.mxu0 %v1609
    %2250 = vmatpush1.bf16.msra.mxu0 %v1608
    %2251 = vmatprep.subr.bf16.mxu0 %v1611
    %2252 = vmatpush1.bf16.msra.mxu0 %v1610
    %2253 = vmatprep.subr.bf16.mxu0 %v1613
    %2254 = vmatpush1.bf16.msra.mxu0 %v1612
    %2255 = vmatprep.subr.bf16.mxu0 %v1615
    %2256 = vmatpush1.bf16.msra.mxu0 %v1614
    %2257 = vmatprep.mubr.bf16.mxu0 %v139
    %2258 = vmatmul.mubr.bf16.gmra.mrb[0].mxu0 %v138
    %v2259 = vpop.f32.mrb[0].mxu0
    %v2260 = vadd.f32 %v2219, %v2259
    %v2261 = vpop.f32.mrb[0].mxu0
    %v2262 = vadd.f32 %v2221, %v2261
    %v2263 = vpop.f32.mrb[0].mxu0
    %v2264 = vpop.f32.mrb[0].mxu0
    %2265 = vdwg.mxu0
    %2266 = vmatprep.subr.bf16.mxu0 %v1617
    %2267 = vmatpush1.bf16.msra.mxu0 %v1616
    %2268 = vmatprep.subr.bf16.mxu0 %v1619
    %2269 = vmatpush1.bf16.msra.mxu0 %v1618
    %2270 = vmatprep.subr.bf16.mxu0 %v1621
    %2271 = vmatpush1.bf16.msra.mxu0 %v1620
    %2272 = vmatprep.subr.bf16.mxu0 %v1623
    %2273 = vmatpush1.bf16.msra.mxu0 %v1622
    %2274 = vmatprep.subr.bf16.mxu0 %v1625
    %2275 = vmatpush1.bf16.msra.mxu0 %v1624
    %2276 = vmatprep.subr.bf16.mxu0 %v1627
    %2277 = vmatpush1.bf16.msra.mxu0 %v1626
    %2278 = vmatprep.subr.bf16.mxu0 %v1629
    %2279 = vmatpush1.bf16.msra.mxu0 %v1628
    %2280 = vmatprep.subr.bf16.mxu0 %v1631
    %2281 = vmatpush1.bf16.msra.mxu0 %v1630
    %2282 = vmatprep.subr.bf16.mxu0 %v1633
    %2283 = vmatpush1.bf16.msra.mxu0 %v1632
    %2284 = vmatprep.subr.bf16.mxu0 %v1635
    %2285 = vmatpush1.bf16.msra.mxu0 %v1634
    %2286 = vmatprep.subr.bf16.mxu0 %v1637
    %2287 = vmatpush1.bf16.msra.mxu0 %v1636
    %2288 = vmatprep.subr.bf16.mxu0 %v1639
    %2289 = vmatpush1.bf16.msra.mxu0 %v1638
    %2290 = vmatprep.subr.bf16.mxu0 %v1641
    %2291 = vmatpush1.bf16.msra.mxu0 %v1640
    %2292 = vmatprep.subr.bf16.mxu0 %v1643
    %2293 = vmatpush1.bf16.msra.mxu0 %v1642
    %2294 = vmatprep.subr.bf16.mxu0 %v1645
    %2295 = vmatpush1.bf16.msra.mxu0 %v1644
    %2296 = vmatprep.subr.bf16.mxu0 %v1647
    %2297 = vmatpush1.bf16.msra.mxu0 %v1646
    %2298 = vmatprep.mubr.bf16.mxu0 %v141
    %2299 = vmatmul.mubr.bf16.gmra.mrb[0].mxu0 %v140
    %v2300 = vpop.f32.mrb[0].mxu0
    %v2301 = vadd.f32 %v2260, %v2300
    %v2302 = vpop.f32.mrb[0].mxu0
    %v2303 = vadd.f32 %v2262, %v2302
    %v2304 = vpop.f32.mrb[0].mxu0
    %v2305 = vpop.f32.mrb[0].mxu0
    %2306 = vdwg.mxu0
    %2307 = vmatprep.subr.bf16.mxu0 %v1649
    %2308 = vmatpush1.bf16.msra.mxu0 %v1648
    %2309 = vmatprep.subr.bf16.mxu0 %v1651
    %2310 = vmatpush1.bf16.msra.mxu0 %v1650
    %2311 = vmatprep.subr.bf16.mxu0 %v1653
    %2312 = vmatpush1.bf16.msra.mxu0 %v1652
    %2313 = vmatprep.subr.bf16.mxu0 %v1655
    %2314 = vmatpush1.bf16.msra.mxu0 %v1654
    %2315 = vmatprep.subr.bf16.mxu0 %v1657
    %2316 = vmatpush1.bf16.msra.mxu0 %v1656
    %2317 = vmatprep.subr.bf16.mxu0 %v1659
    %2318 = vmatpush1.bf16.msra.mxu0 %v1658
    %2319 = vmatprep.subr.bf16.mxu0 %v1661
    %2320 = vmatpush1.bf16.msra.mxu0 %v1660
    %2321 = vmatprep.subr.bf16.mxu0 %v1663
    %2322 = vmatpush1.bf16.msra.mxu0 %v1662
    %2323 = vmatprep.subr.bf16.mxu0 %v1665
    %2324 = vmatpush1.bf16.msra.mxu0 %v1664
    %2325 = vmatprep.subr.bf16.mxu0 %v1667
    %2326 = vmatpush1.bf16.msra.mxu0 %v1666
    %2327 = vmatprep.subr.bf16.mxu0 %v1669
    %2328 = vmatpush1.bf16.msra.mxu0 %v1668
    %2329 = vmatprep.subr.bf16.mxu0 %v1671
    %2330 = vmatpush1.bf16.msra.mxu0 %v1670
    %2331 = vmatprep.subr.bf16.mxu0 %v1673
    %2332 = vmatpush1.bf16.msra.mxu0 %v1672
    %2333 = vmatprep.subr.bf16.mxu0 %v1675
    %2334 = vmatpush1.bf16.msra.mxu0 %v1674
    %2335 = vmatprep.subr.bf16.mxu0 %v1677
    %2336 = vmatpush1.bf16.msra.mxu0 %v1676
    %2337 = vmatprep.subr.bf16.mxu0 %v1679
    %2338 = vmatpush1.bf16.msra.mxu0 %v1678
    %2339 = vmatprep.mubr.bf16.mxu0 %v143
    %2340 = vmatmul.mubr.bf16.gmra.mrb[0].mxu0 %v142
    %v2341 = vpop.f32.mrb[0].mxu0
    %v2342 = vadd.f32 %v2301, %v2341
    %v2343 = vpop.f32.mrb[0].mxu0
    %v2344 = vadd.f32 %v2303, %v2343
    %v2345 = vpop.f32.mrb[0].mxu0
    %v2346 = vpop.f32.mrb[0].mxu0
    %2347 = vdwg.mxu0
    %v2348 = vmax.f32 %v2342, 0.0
    %v2349 = vmax.f32 %v2344, 0.0
    %v2350 = vld [vmem:[#allocation7] sm:$0xf]
    %v2352 = vlaneseq
    %v2353 = vshrl.u32 %v2352, 7
    %v2354 = vsub.s32 0, %v2353
    %v2355 = vrot.slane %v2350, %v2354
    %v2356 = vlaneseq
    %v2357 = vshrl.u32 %v2356, 7
    %v2358 = vsub.s32 2, %v2357
    %v2359 = vrot.slane %v2350, %v2358
    %v2362 = vlaneseq
    %v2363 = vshrl.u32 %v2362, 7
    %v2364 = vsub.s32 0, %v2363
    %v2365 = vrot.slane %v2355, %v2364
    %v2366 = vlaneseq
    %v2367 = vshrl.u32 %v2366, 7
    %v2368 = vsub.s32 0, %v2367
    %v2369 = vrot.slane %v2359, %v2368
    %v2370 = vmul.f32 %v2348, %v2365
    %v2371 = vmul.f32 %v2349, %v2369
    %v2372 = vadd.f32 %v2370, %v2371
    %2373 = vadd.xlane.f32.xlu0 %v2372
    %v2374 = vpop.xlane.xlu0 %2373
    %v2375 = vlaneseq
    %v2376 = vshrl.u32 %v2375, 7
    %v2377 = vsub.s32 1, %v2376
    %v2378 = vrot.slane %v2350, %v2377
    %v2379 = vlaneseq
    %v2380 = vshrl.u32 %v2379, 7
    %v2381 = vsub.s32 3, %v2380
    %v2382 = vrot.slane %v2350, %v2381
    %v2385 = vlaneseq
    %v2386 = vshrl.u32 %v2385, 7
    %v2387 = vsub.s32 1, %v2386
    %v2388 = vrot.slane %v2378, %v2387
    %v2389 = vlaneseq
    %v2390 = vshrl.u32 %v2389, 7
    %v2391 = vsub.s32 1, %v2390
    %v2392 = vrot.slane %v2382, %v2391
    %v2393 = vmul.f32 %v2348, %v2388
    %v2394 = vmul.f32 %v2349, %v2392
    %v2395 = vadd.f32 %v2393, %v2394
    %2396 = vadd.xlane.f32.xlu0 %v2395
    %v2397 = vpop.xlane.xlu0 %2396
    %vm2398 = vcmask 7168
    %v2399 = vsel %vm2398, %v2374, %v2397
    %v2400 = vld [vmem:[#allocation9] sm:$0x1]
    %v2402 = vlaneseq
    %v2403 = vshrl.u32 %v2402, 7
    %v2404 = vsub.s32 0, %v2403
    %v2405 = vrot.slane %v2400, %v2404
    %v2407 = vadd.f32 %v2399, %v2405
    %vm2408 = vcmask 15360
    %v2409 = vsel %vm2408, %v2407, -inf
    %2410 = vmax.xlane.f32.xlu0 %v2409
    %v2411 = vpop.xlane.xlu0 %2410
    %v2412 = vsub.f32 %v2407, %v2411
    %v2413 = vmul.f32 %v2412, 1.442695
    %v2414 = vpow.pop %v2413
    %v2415 = vsel %vm2408, %v2414, 0.0
    %2416 = vadd.xlane.f32.xlu0 %v2415
    %v2417 = vpop.xlane.xlu0 %2416
    %v2418 = vlog2.pop %v2417
    %v2419 = vmul.f32 %v2418, 0.6931472
    %v2420 = vsub.f32 %v2412, %v2419
    %2421 = vst.msk [vmem:[%s5] sm:$0xff] %vm2408, %v2420
    // Predicated region
    $region42: #{concat_eff_models_fc.1} parent=1 // pred_check
      _
    $region43: #{concat_eff_models_fc.1} parent=1 // pred_check_branch
      %2423 = sbr.rel (0) target = $region45
    $region44: #{concat_eff_models_fc.1} parent=1 // pred_region
      _
    $region45: #{concat_eff_models_fc.1} parent=1 // pred_fallthru
      _
    // Predicated region
    $region46: #{concat_eff_models_fc.1} parent=1 // pred_check
      _
    $region47: #{concat_eff_models_fc.1} parent=1 // pred_check_branch
      %2425 = sbr.rel (0) target = $region49
    $region48: #{concat_eff_models_fc.1} parent=1 // pred_region
      _
    $region49: #{concat_eff_models_fc.1} parent=1 // pred_fallthru
      _
    %2426 = vsyncpa [#allocation3], 1
    %2427 = vsyncpa [#allocation5], 1
    %2428 = vsyncpa [#allocation8], 1

</llo_original>
